<compile_context>
chip_gen: v5e
topology: v5e:2x2
jax: 0.10.0
libtpu: 0.0.40
codegen_flags: <defaults>
</compile_context>

<pallas_src>
import functools

import jax
import jax.numpy as jnp
from jax.experimental import pallas as pl
from jax.experimental.pallas import tpu as pltpu


# ---------------------------------------------------------------------------
# Fused kernel: 1x1 expand (+BN+ReLU) -> 3x3 depthwise (+BN+ReLU) ->
#               1x1 project (+BN) [+ residual shortcut]
# One grid step = one batch element.  The hidden activation lives entirely in
# VMEM / vregs for the duration of the step.
# ---------------------------------------------------------------------------
def _linear_bottleneck_kernel(x_ref, m_ref, w1_ref, b1_ref, w2_ref, b2_ref,
                              w3_ref, b3_ref, o_ref, *, stride, use_shortcut):
    _, Ho, Wo, Cout = o_ref.shape
    xb = x_ref[0]                               # (s*Hg, s*Wg, Cin), deinterleaved+padded
    sHg, sWg, _ = xb.shape
    Hg, Wg = sHg // stride, sWg // stride
    hidden = w1_ref.shape[1]

    # ---- Stage 1: 1x1 expand conv (BN scale folded into w1) + bias + ReLU ----
    xf = xb.reshape(sHg * sWg, xb.shape[-1])
    h = jnp.dot(xf, w1_ref[...], preferred_element_type=jnp.float32)
    h = jnp.maximum(h + b1_ref[...], 0.0)
    h = h * m_ref[...]                          # zero the halo ring -> depthwise sees zero padding
    h = h.reshape(sHg, sWg, hidden)

    # ---- Stage 2: 3x3 depthwise conv (stride), BN folded, + bias + ReLU -----
    # Thanks to the host-side deinterleave, every tap is a contiguous static
    # slice: padded position (oh*s + kh, ow*s + kw) lives at
    # row (kh % s)*Hg + kh//s + oh, col (kw % s)*Wg + kw//s + ow.
    acc = jnp.zeros((Ho, Wo, hidden), jnp.float32)
    for kh in range(3):
        for kw in range(3):
            r0 = (kh % stride) * Hg + kh // stride
            c0 = (kw % stride) * Wg + kw // stride
            w2k = w2_ref[kh * 3 + kw].reshape(1, 1, hidden)
            acc = acc + h[r0:r0 + Ho, c0:c0 + Wo, :] * w2k
    z = jnp.maximum(acc.reshape(Ho * Wo, hidden) + b2_ref[...], 0.0)

    # ---- Stage 3: 1x1 project conv (BN folded) + bias (+ residual) ----------
    y = jnp.dot(z, w3_ref[...], preferred_element_type=jnp.float32) + b3_ref[...]
    y = y.reshape(Ho, Wo, Cout)
    if use_shortcut:
        # stride == 1 and Cin == Cout: residual is the un-padded input window.
        y = y + xb[1:1 + Ho, 1:1 + Wo, :].astype(jnp.float32)
    o_ref[0] = y.astype(o_ref.dtype)


# ---------------------------------------------------------------------------
# Public forward: NCHW in / NCHW out (PyTorch convention), eval-mode BN.
# ---------------------------------------------------------------------------
@functools.partial(jax.jit, static_argnames=("stride",))
def linear_bottleneck_forward(params, x_nchw, *, stride):
    assert stride in (1, 2), "MobileNetV2 LinearBottleneck uses stride 1 or 2"
    N, Cin, H, W = x_nchw.shape
    hidden = params["w1"].shape[0]
    Cout = params["w3"].shape[0]
    use_shortcut = (stride == 1) and (Cin == Cout)

    s = stride
    Hg = -(-(H + 2) // s)                       # ceil((H+2)/s): padded row groups
    Wg = -(-(W + 2) // s)
    Ho = (H - 1) // s + 1
    Wo = (W - 1) // s + 1

    x = jnp.transpose(x_nchw, (0, 2, 3, 1))     # NHWC (channels on the lane axis)

    # Zero-pad spatially (pad=1 for the depthwise conv) and deinterleave
    # rows/cols by the stride so all in-kernel tap slices are contiguous.
    xp = jnp.pad(x, ((0, 0), (1, Hg * s - H - 1), (1, Wg * s - W - 1), (0, 0)))
    x_d = (xp.reshape(N, Hg, s, Wg, s, Cin)
             .transpose(0, 2, 1, 4, 3, 5)
             .reshape(N, s * Hg, s * Wg, Cin))

    # Mask of real (non-padding) positions, in the same deinterleaved order,
    # flattened to (s*Hg*s*Wg, 1) so it broadcasts against the 2-D hidden.
    rows = jnp.arange(Hg * s)
    cols = jnp.arange(Wg * s)
    m2d = (((rows >= 1) & (rows <= H))[:, None]
           & ((cols >= 1) & (cols <= W))[None, :]).astype(x.dtype)
    m_d = (m2d.reshape(Hg, s, Wg, s)
              .transpose(1, 0, 3, 2)
              .reshape(s * Hg * s * Wg, 1))

    # Fold BN (eval mode) scale into the conv weights; biases stay separate.
    w1s = params["w1"][:, :, 0, 0].T * params["s1"][None, :]               # (Cin, hidden)
    b1 = params["b1"].reshape(1, hidden)
    w2s = (params["w2"][:, 0].reshape(hidden, 9).T
           * params["s2"][None, :])                                        # (9, hidden)
    b2 = params["b2"].reshape(1, hidden)
    w3s = params["w3"][:, :, 0, 0].T * params["s3"][None, :]               # (hidden, Cout)
    b3 = params["b3"].reshape(1, Cout)

    kernel = functools.partial(_linear_bottleneck_kernel,
                               stride=s, use_shortcut=use_shortcut)

    # TODO(synk): for large spatial inputs, tile the grid over output-row blocks
    # with a manual halo DMA instead of one whole image per grid step (VMEM
    # headroom on v7x/v5e); at these shapes one image per step fits easily.
    # TODO(synk): for realistic (>=128) channel counts, store activations in
    # bf16 and repack the output lane dim to be 128-dense; kept f32 here to
    # match the f32 reference within tight tolerance.
    out = pl.pallas_call(
        kernel,
        out_shape=jax.ShapeDtypeStruct((N, Ho, Wo, Cout), x.dtype),
        grid=(N,),
        in_specs=[
            pl.BlockSpec((1, s * Hg, s * Wg, Cin), lambda n: (n, 0, 0, 0)),
            pl.BlockSpec((s * Hg * s * Wg, 1), lambda n: (0, 0)),
            pl.BlockSpec((Cin, hidden), lambda n: (0, 0)),
            pl.BlockSpec((1, hidden), lambda n: (0, 0)),
            pl.BlockSpec((9, hidden), lambda n: (0, 0)),
            pl.BlockSpec((1, hidden), lambda n: (0, 0)),
            pl.BlockSpec((hidden, Cout), lambda n: (0, 0)),
            pl.BlockSpec((1, Cout), lambda n: (0, 0)),
        ],
        out_specs=pl.BlockSpec((1, Ho, Wo, Cout), lambda n: (n, 0, 0, 0)),
        compiler_params=pltpu.CompilerParams(
            dimension_semantics=("parallel",)),
    )(x_d, m_d, w1s, b1, w2s, b2, w3s, b3)

    return jnp.transpose(out, (0, 3, 1, 2))     # back to NCHW


# ---------------------------------------------------------------------------
# Parameter init (deterministic, shapes match the PyTorch module)
# ---------------------------------------------------------------------------
def init_linear_bottleneck_params(key, in_channels, out_channels, t):
    hidden = in_channels * t
    ks = jax.random.split(key, 15)

    def conv_w(k, shape, fan_in):
        bound = 1.0 / jnp.sqrt(jnp.float32(fan_in))
        return jax.random.uniform(k, shape, jnp.float32, -bound, bound)

    def bn_fold(k0, k1, k2, k3, c):
        gamma = jax.random.uniform(k0, (c,), jnp.float32, 0.5, 1.5)
        beta = jax.random.uniform(k1, (c,), jnp.float32, -0.5, 0.5)
        mean = jax.random.uniform(k2, (c,), jnp.float32, -0.5, 0.5)
        var = jax.random.uniform(k3, (c,), jnp.float32, 0.5, 1.5)
        scale = gamma / jnp.sqrt(var + 1e-5)
        bias = beta - mean * scale
        return scale, bias

    params = {}
    params["w1"] = conv_w(ks[0], (hidden, in_channels, 1, 1), in_channels)   # 1x1 expand
    params["w2"] = conv_w(ks[1], (hidden, 1, 3, 3), 9)                       # depthwise 3x3
    params["w3"] = conv_w(ks[2], (out_channels, hidden, 1, 1), hidden)       # 1x1 project
    params["s1"], params["b1"] = bn_fold(ks[3], ks[4], ks[5], ks[6], hidden)
    params["s2"], params["b2"] = bn_fold(ks[7], ks[8], ks[9], ks[10], hidden)
    params["s3"], params["b3"] = bn_fold(ks[11], ks[12], ks[13], ks[14], out_channels)
    return params


# ---------------------------------------------------------------------------
# Pure-JAX reference (mirrors the PyTorch module, eval-mode BN)
# ---------------------------------------------------------------------------
def reference_forward(params, x, *, stride, in_channels, out_channels):
    use_shortcut = (stride == 1) and (in_channels == out_channels)
    dn = ("NCHW", "OIHW", "NCHW")
    hidden = params["w1"].shape[0]

    def bn(y, s, b):
        return y * s[None, :, None, None] + b[None, :, None, None]

    y = jax.lax.conv_general_dilated(x, params["w1"], (1, 1), "VALID",
                                     dimension_numbers=dn)
    y = jnp.maximum(bn(y, params["s1"], params["b1"]), 0.0)
    y = jax.lax.conv_general_dilated(y, params["w2"], (stride, stride),
                                     ((1, 1), (1, 1)), dimension_numbers=dn,
                                     feature_group_count=hidden)
    y = jnp.maximum(bn(y, params["s2"], params["b2"]), 0.0)
    y = jax.lax.conv_general_dilated(y, params["w3"], (1, 1), "VALID",
                                     dimension_numbers=dn)
    y = bn(y, params["s3"], params["b3"])
    if use_shortcut:
        y = x + y
    return y


if __name__ == "__main__":
    key = jax.random.PRNGKey(0)
    kx, kp1, kp2 = jax.random.split(key, 3)

    # Config A: defaults (t=6, stride=2) -> no shortcut
    in_c, out_c, t, stride = 4, 8, 6, 2
    x = jax.random.normal(kx, (2, in_c, 16, 16), jnp.float32)
    params_a = init_linear_bottleneck_params(kp1, in_c, out_c, t)
    out_a = linear_bottleneck_forward(params_a, x, stride=stride)
    jax.block_until_ready(out_a)
    ref_a = reference_forward(params_a, x, stride=stride,
                              in_channels=in_c, out_channels=out_c)
    assert out_a.shape == ref_a.shape == (2, out_c, 8, 8)
    assert jnp.allclose(out_a, ref_a, rtol=1e-3, atol=1e-4), "mismatch (config A)"

    # Config B: stride=1, in==out -> exercises the residual shortcut
    in_c2, out_c2, stride2 = 4, 4, 1
    params_b = init_linear_bottleneck_params(kp2, in_c2, out_c2, t)
    out_b = linear_bottleneck_forward(params_b, x, stride=stride2)
    jax.block_until_ready(out_b)
    ref_b = reference_forward(params_b, x, stride=stride2,
                              in_channels=in_c2, out_channels=out_c2)
    assert out_b.shape == ref_b.shape == (2, out_c2, 16, 16)
    assert jnp.allclose(out_b, ref_b, rtol=1e-3, atol=1e-4), "mismatch (config B)"

    print("KERNEL_OK")
</pallas_src>

<mosaic_0001>
module attributes {stable_mosaic.version = 11 : i64} {
  func.func @_linear_bottleneck_kernel(%arg0: i32, %arg1: memref<1x18x18x4xf32, #tpu.memory_space<vmem>>, %arg2: memref<324x1xf32, #tpu.memory_space<vmem>>, %arg3: memref<4x24xf32, #tpu.memory_space<vmem>>, %arg4: memref<1x24xf32, #tpu.memory_space<vmem>>, %arg5: memref<9x24xf32, #tpu.memory_space<vmem>>, %arg6: memref<1x24xf32, #tpu.memory_space<vmem>>, %arg7: memref<24x8xf32, #tpu.memory_space<vmem>>, %arg8: memref<1x8xf32, #tpu.memory_space<vmem>>, %arg9: memref<1x8x8x8xf32, #tpu.memory_space<vmem>>) attributes {dimension_semantics = [#tpu.dimension_semantics<parallel>], iteration_bounds = array<i64: 2>, scalar_prefetch = 0 : i64, scratch_operands = 0 : i64, tpu.core_type = #tpu.core_type<tc>, window_params = [{transform_indices = @transform_0, window_bounds = array<i64: 1, 18, 18, 4>}, {pipeline_mode = #tpu.pipeline_mode<synchronous>, transform_indices = @transform_1, window_bounds = array<i64: 324, 1>}, {pipeline_mode = #tpu.pipeline_mode<synchronous>, transform_indices = @transform_2, window_bounds = array<i64: 4, 24>}, {pipeline_mode = #tpu.pipeline_mode<synchronous>, transform_indices = @transform_3, window_bounds = array<i64: 1, 24>}, {pipeline_mode = #tpu.pipeline_mode<synchronous>, transform_indices = @transform_4, window_bounds = array<i64: 9, 24>}, {pipeline_mode = #tpu.pipeline_mode<synchronous>, transform_indices = @transform_5, window_bounds = array<i64: 1, 24>}, {pipeline_mode = #tpu.pipeline_mode<synchronous>, transform_indices = @transform_6, window_bounds = array<i64: 24, 8>}, {pipeline_mode = #tpu.pipeline_mode<synchronous>, transform_indices = @transform_7, window_bounds = array<i64: 1, 8>}, {transform_indices = @transform_8, window_bounds = array<i64: 1, 8, 8, 8>}]} {
    %c0 = arith.constant 0 : index
    %c0_0 = arith.constant 0 : index
    %c0_1 = arith.constant 0 : index
    %c0_2 = arith.constant 0 : index
    %0 = vector.load %arg1[%c0, %c0_0, %c0_1, %c0_2] : memref<1x18x18x4xf32, #tpu.memory_space<vmem>>, vector<1x18x18x4xf32>
    %1 = vector.shape_cast %0 : vector<1x18x18x4xf32> to vector<18x18x4xf32>
    %2 = vector.shape_cast %1 : vector<18x18x4xf32> to vector<324x4xf32>
    %c0_3 = arith.constant 0 : index
    %c0_4 = arith.constant 0 : index
    %3 = vector.load %arg3[%c0_3, %c0_4] : memref<4x24xf32, #tpu.memory_space<vmem>>, vector<4x24xf32>
    %cst = arith.constant dense<0.000000e+00> : vector<324x24xf32>
    %4 = tpu.matmul %2, %3, %cst {dimension_numbers = #tpu.dot_dimension_numbers<[1], [0], [0], [1], [0, 0, 1, 1], [], []>} : vector<324x4xf32>, vector<4x24xf32>, vector<324x24xf32> -> vector<324x24xf32>
    %c0_5 = arith.constant 0 : index
    %c0_6 = arith.constant 0 : index
    %5 = vector.load %arg4[%c0_5, %c0_6] : memref<1x24xf32, #tpu.memory_space<vmem>>, vector<1x24xf32>
    %6 = vector.broadcast %5 : vector<1x24xf32> to vector<324x24xf32>
    %7 = arith.addf %4, %6 : vector<324x24xf32>
    %cst_7 = arith.constant 0.000000e+00 : f32
    %8 = vector.broadcast %cst_7 : f32 to vector<324x24xf32>
    %9 = arith.maximumf %7, %8 : vector<324x24xf32>
    %c0_8 = arith.constant 0 : index
    %c0_9 = arith.constant 0 : index
    %10 = vector.load %arg2[%c0_8, %c0_9] : memref<324x1xf32, #tpu.memory_space<vmem>>, vector<324x1xf32>
    %11 = vector.broadcast %10 : vector<324x1xf32> to vector<324x24xf32>
    %12 = arith.mulf %9, %11 : vector<324x24xf32>
    %13 = vector.shape_cast %12 : vector<324x24xf32> to vector<18x18x24xf32>
    %cst_10 = arith.constant 0.000000e+00 : f32
    %14 = vector.broadcast %cst_10 : f32 to vector<8x8x24xf32>
    %c0_11 = arith.constant 0 : index
    %c0_12 = arith.constant 0 : index
    %15 = vector.load %arg5[%c0_11, %c0_12] : memref<9x24xf32, #tpu.memory_space<vmem>>, vector<1x24xf32>
    %16 = vector.shape_cast %15 : vector<1x24xf32> to vector<24xf32>
    %17 = vector.shape_cast %16 : vector<24xf32> to vector<1x1x24xf32>
    %18 = vector.extract_strided_slice %13 {offsets = [0, 0, 0], sizes = [8, 8, 24], strides = [1, 1, 1]} : vector<18x18x24xf32> to vector<8x8x24xf32>
    %19 = vector.broadcast %17 : vector<1x1x24xf32> to vector<8x8x24xf32>
    %20 = arith.mulf %18, %19 : vector<8x8x24xf32>
    %21 = arith.addf %14, %20 : vector<8x8x24xf32>
    %c1 = arith.constant 1 : index
    %c0_13 = arith.constant 0 : index
    %22 = vector.load %arg5[%c1, %c0_13] : memref<9x24xf32, #tpu.memory_space<vmem>>, vector<1x24xf32>
    %23 = vector.shape_cast %22 : vector<1x24xf32> to vector<24xf32>
    %24 = vector.shape_cast %23 : vector<24xf32> to vector<1x1x24xf32>
    %25 = vector.extract_strided_slice %13 {offsets = [0, 9, 0], sizes = [8, 8, 24], strides = [1, 1, 1]} : vector<18x18x24xf32> to vector<8x8x24xf32>
    %26 = vector.broadcast %24 : vector<1x1x24xf32> to vector<8x8x24xf32>
    %27 = arith.mulf %25, %26 : vector<8x8x24xf32>
    %28 = arith.addf %21, %27 : vector<8x8x24xf32>
    %c2 = arith.constant 2 : index
    %c0_14 = arith.constant 0 : index
    %29 = vector.load %arg5[%c2, %c0_14] : memref<9x24xf32, #tpu.memory_space<vmem>>, vector<1x24xf32>
    %30 = vector.shape_cast %29 : vector<1x24xf32> to vector<24xf32>
    %31 = vector.shape_cast %30 : vector<24xf32> to vector<1x1x24xf32>
    %32 = vector.extract_strided_slice %13 {offsets = [0, 1, 0], sizes = [8, 8, 24], strides = [1, 1, 1]} : vector<18x18x24xf32> to vector<8x8x24xf32>
    %33 = vector.broadcast %31 : vector<1x1x24xf32> to vector<8x8x24xf32>
    %34 = arith.mulf %32, %33 : vector<8x8x24xf32>
    %35 = arith.addf %28, %34 : vector<8x8x24xf32>
    %c3 = arith.constant 3 : index
    %c0_15 = arith.constant 0 : index
    %36 = vector.load %arg5[%c3, %c0_15] : memref<9x24xf32, #tpu.memory_space<vmem>>, vector<1x24xf32>
    %37 = vector.shape_cast %36 : vector<1x24xf32> to vector<24xf32>
    %38 = vector.shape_cast %37 : vector<24xf32> to vector<1x1x24xf32>
    %39 = vector.extract_strided_slice %13 {offsets = [9, 0, 0], sizes = [8, 8, 24], strides = [1, 1, 1]} : vector<18x18x24xf32> to vector<8x8x24xf32>
    %40 = vector.broadcast %38 : vector<1x1x24xf32> to vector<8x8x24xf32>
    %41 = arith.mulf %39, %40 : vector<8x8x24xf32>
    %42 = arith.addf %35, %41 : vector<8x8x24xf32>
    %c4 = arith.constant 4 : index
    %c0_16 = arith.constant 0 : index
    %43 = vector.load %arg5[%c4, %c0_16] : memref<9x24xf32, #tpu.memory_space<vmem>>, vector<1x24xf32>
    %44 = vector.shape_cast %43 : vector<1x24xf32> to vector<24xf32>
    %45 = vector.shape_cast %44 : vector<24xf32> to vector<1x1x24xf32>
    %46 = vector.extract_strided_slice %13 {offsets = [9, 9, 0], sizes = [8, 8, 24], strides = [1, 1, 1]} : vector<18x18x24xf32> to vector<8x8x24xf32>
    %47 = vector.broadcast %45 : vector<1x1x24xf32> to vector<8x8x24xf32>
    %48 = arith.mulf %46, %47 : vector<8x8x24xf32>
    %49 = arith.addf %42, %48 : vector<8x8x24xf32>
    %c5 = arith.constant 5 : index
    %c0_17 = arith.constant 0 : index
    %50 = vector.load %arg5[%c5, %c0_17] : memref<9x24xf32, #tpu.memory_space<vmem>>, vector<1x24xf32>
    %51 = vector.shape_cast %50 : vector<1x24xf32> to vector<24xf32>
    %52 = vector.shape_cast %51 : vector<24xf32> to vector<1x1x24xf32>
    %53 = vector.extract_strided_slice %13 {offsets = [9, 1, 0], sizes = [8, 8, 24], strides = [1, 1, 1]} : vector<18x18x24xf32> to vector<8x8x24xf32>
    %54 = vector.broadcast %52 : vector<1x1x24xf32> to vector<8x8x24xf32>
    %55 = arith.mulf %53, %54 : vector<8x8x24xf32>
    %56 = arith.addf %49, %55 : vector<8x8x24xf32>
    %c6 = arith.constant 6 : index
    %c0_18 = arith.constant 0 : index
    %57 = vector.load %arg5[%c6, %c0_18] : memref<9x24xf32, #tpu.memory_space<vmem>>, vector<1x24xf32>
    %58 = vector.shape_cast %57 : vector<1x24xf32> to vector<24xf32>
    %59 = vector.shape_cast %58 : vector<24xf32> to vector<1x1x24xf32>
    %60 = vector.extract_strided_slice %13 {offsets = [1, 0, 0], sizes = [8, 8, 24], strides = [1, 1, 1]} : vector<18x18x24xf32> to vector<8x8x24xf32>
    %61 = vector.broadcast %59 : vector<1x1x24xf32> to vector<8x8x24xf32>
    %62 = arith.mulf %60, %61 : vector<8x8x24xf32>
    %63 = arith.addf %56, %62 : vector<8x8x24xf32>
    %c7 = arith.constant 7 : index
    %c0_19 = arith.constant 0 : index
    %64 = vector.load %arg5[%c7, %c0_19] : memref<9x24xf32, #tpu.memory_space<vmem>>, vector<1x24xf32>
    %65 = vector.shape_cast %64 : vector<1x24xf32> to vector<24xf32>
    %66 = vector.shape_cast %65 : vector<24xf32> to vector<1x1x24xf32>
    %67 = vector.extract_strided_slice %13 {offsets = [1, 9, 0], sizes = [8, 8, 24], strides = [1, 1, 1]} : vector<18x18x24xf32> to vector<8x8x24xf32>
    %68 = vector.broadcast %66 : vector<1x1x24xf32> to vector<8x8x24xf32>
    %69 = arith.mulf %67, %68 : vector<8x8x24xf32>
    %70 = arith.addf %63, %69 : vector<8x8x24xf32>
    %c8 = arith.constant 8 : index
    %c0_20 = arith.constant 0 : index
    %71 = vector.load %arg5[%c8, %c0_20] : memref<9x24xf32, #tpu.memory_space<vmem>>, vector<1x24xf32>
    %72 = vector.shape_cast %71 : vector<1x24xf32> to vector<24xf32>
    %73 = vector.shape_cast %72 : vector<24xf32> to vector<1x1x24xf32>
    %74 = vector.extract_strided_slice %13 {offsets = [1, 1, 0], sizes = [8, 8, 24], strides = [1, 1, 1]} : vector<18x18x24xf32> to vector<8x8x24xf32>
    %75 = vector.broadcast %73 : vector<1x1x24xf32> to vector<8x8x24xf32>
    %76 = arith.mulf %74, %75 : vector<8x8x24xf32>
    %77 = arith.addf %70, %76 : vector<8x8x24xf32>
    %78 = vector.shape_cast %77 : vector<8x8x24xf32> to vector<64x24xf32>
    %c0_21 = arith.constant 0 : index
    %c0_22 = arith.constant 0 : index
    %79 = vector.load %arg6[%c0_21, %c0_22] : memref<1x24xf32, #tpu.memory_space<vmem>>, vector<1x24xf32>
    %80 = vector.broadcast %79 : vector<1x24xf32> to vector<64x24xf32>
    %81 = arith.addf %78, %80 : vector<64x24xf32>
    %cst_23 = arith.constant 0.000000e+00 : f32
    %82 = vector.broadcast %cst_23 : f32 to vector<64x24xf32>
    %83 = arith.maximumf %81, %82 : vector<64x24xf32>
    %c0_24 = arith.constant 0 : index
    %c0_25 = arith.constant 0 : index
    %84 = vector.load %arg7[%c0_24, %c0_25] : memref<24x8xf32, #tpu.memory_space<vmem>>, vector<24x8xf32>
    %cst_26 = arith.constant dense<0.000000e+00> : vector<64x8xf32>
    %85 = tpu.matmul %83, %84, %cst_26 {dimension_numbers = #tpu.dot_dimension_numbers<[1], [0], [0], [1], [0, 0, 1, 1], [], []>} : vector<64x24xf32>, vector<24x8xf32>, vector<64x8xf32> -> vector<64x8xf32>
    %c0_27 = arith.constant 0 : index
    %c0_28 = arith.constant 0 : index
    %86 = vector.load %arg8[%c0_27, %c0_28] : memref<1x8xf32, #tpu.memory_space<vmem>>, vector<1x8xf32>
    %87 = vector.broadcast %86 : vector<1x8xf32> to vector<64x8xf32>
    %88 = arith.addf %85, %87 : vector<64x8xf32>
    %89 = vector.shape_cast %88 : vector<64x8xf32> to vector<8x8x8xf32>
    %c0_29 = arith.constant 0 : index
    %c0_30 = arith.constant 0 : index
    %c0_31 = arith.constant 0 : index
    %c0_32 = arith.constant 0 : index
    %90 = vector.load %arg9[%c0_29, %c0_30, %c0_31, %c0_32] : memref<1x8x8x8xf32, #tpu.memory_space<vmem>>, vector<1x8x8x8xf32>
    %91 = vector.shape_cast %90 : vector<1x8x8x8xf32> to vector<8x8x8xf32>
    %92 = vector.shape_cast %89 : vector<8x8x8xf32> to vector<1x8x8x8xf32>
    tpu.vector_store %arg9[%c0_29, %c0_30, %c0_31, %c0_32], %92 {strides = array<i32>} : memref<1x8x8x8xf32, #tpu.memory_space<vmem>>, vector<1x8x8x8xf32>,
    return
  }
  func.func @transform_0(%arg0: i32) -> (i32, i32, i32, i32) {
    %c0_i32 = arith.constant 0 : i32
    %c0_i32_0 = arith.constant 0 : i32
    %c0_i32_1 = arith.constant 0 : i32
    %c0_i32_2 = arith.constant 0 : i32
    return %arg0, %c0_i32, %c0_i32_0, %c0_i32_1 : i32, i32, i32, i32
  }
  func.func @transform_1(%arg0: i32) -> (i32, i32) {
    %c0_i32 = arith.constant 0 : i32
    %c0_i32_0 = arith.constant 0 : i32
    %c0_i32_1 = arith.constant 0 : i32
    return %c0_i32, %c0_i32_0 : i32, i32
  }
  func.func @transform_2(%arg0: i32) -> (i32, i32) {
    %c0_i32 = arith.constant 0 : i32
    %c0_i32_0 = arith.constant 0 : i32
    %c0_i32_1 = arith.constant 0 : i32
    return %c0_i32, %c0_i32_0 : i32, i32
  }
  func.func @transform_3(%arg0: i32) -> (i32, i32) {
    %c0_i32 = arith.constant 0 : i32
    %c0_i32_0 = arith.constant 0 : i32
    %c0_i32_1 = arith.constant 0 : i32
    return %c0_i32, %c0_i32_0 : i32, i32
  }
  func.func @transform_4(%arg0: i32) -> (i32, i32) {
    %c0_i32 = arith.constant 0 : i32
    %c0_i32_0 = arith.constant 0 : i32
    %c0_i32_1 = arith.constant 0 : i32
    return %c0_i32, %c0_i32_0 : i32, i32
  }
  func.func @transform_5(%arg0: i32) -> (i32, i32) {
    %c0_i32 = arith.constant 0 : i32
    %c0_i32_0 = arith.constant 0 : i32
    %c0_i32_1 = arith.constant 0 : i32
    return %c0_i32, %c0_i32_0 : i32, i32
  }
  func.func @transform_6(%arg0: i32) -> (i32, i32) {
    %c0_i32 = arith.constant 0 : i32
    %c0_i32_0 = arith.constant 0 : i32
    %c0_i32_1 = arith.constant 0 : i32
    return %c0_i32, %c0_i32_0 : i32, i32
  }
  func.func @transform_7(%arg0: i32) -> (i32, i32) {
    %c0_i32 = arith.constant 0 : i32
    %c0_i32_0 = arith.constant 0 : i32
    %c0_i32_1 = arith.constant 0 : i32
    return %c0_i32, %c0_i32_0 : i32, i32
  }
  func.func @transform_8(%arg0: i32) -> (i32, i32, i32, i32) {
    %c0_i32 = arith.constant 0 : i32
    %c0_i32_0 = arith.constant 0 : i32
    %c0_i32_1 = arith.constant 0 : i32
    %c0_i32_2 = arith.constant 0 : i32
    return %arg0, %c0_i32, %c0_i32_0, %c0_i32_1 : i32, i32, i32, i32
  }
}

</mosaic_0001>

<llo_original>
// kernel: squeeze.4
$region0: #{squeeze.4}
  %s0 = inlined_call_operand.vmem [shape: f32[24,3,3], index: 0, kind: input, shape index: {}]
  %s1 = inlined_call_operand.vmem [shape: f32[24,9], index: 1, kind: output, shape index: {}]
  $region1: #{squeeze.4} parent=0
    #allocation0 [shape = 'u8[12288]{0}', space=vmem, size = 0x3000, scoped, tag = 'scoped mem for input reshape']
    %s3 = ssub.s32 16, 1
    %s4 = scalar_lea.vmem %s0, 8
    %v5 = vld [vmem:[%s4] sm:%s3]
    %s6 = scalar_lea.vmem [#allocation0], 16
    %7 = vst [vmem:[%s6] sm:%s3] %v5
    %s8 = scalar_lea.vmem %s0, 4
    %v9 = vld [vmem:[%s8] sm:%s3]
    %s10 = scalar_lea.vmem [#allocation0], 8
    %11 = vst [vmem:[%s10] sm:%s3] %v9
    %v12 = vld [vmem:[%s0] sm:%s3]
    %13 = vst [vmem:[#allocation0] sm:%s3] %v12
    %v14 = vld [vmem:[#allocation0] sm:$0x7]
    %vm15 = vcmask 195584
    %16 = vst.msk [vmem:[%s1] sm:$0x7] %vm15, %v14
    %s17 = scalar_lea.vmem [#allocation0], 8
    %v18 = vld [vmem:[%s17] sm:$0x7]
    %vm19 = vcmask 195584
    %s20 = scalar_lea.vmem %s1, 3
    %21 = vst.msk [vmem:[%s20] sm:$0x7] %vm19, %v18
    %s22 = scalar_lea.vmem [#allocation0], 16
    %v23 = vld [vmem:[%s22] sm:$0x7]
    %vm24 = vcmask 195584
    %s25 = scalar_lea.vmem %s1, 6
    %26 = vst.msk [vmem:[%s25] sm:$0x7] %vm24, %v23

// kernel: linear_bottleneck_forward.1
$region0: #{linear_bottleneck_forward.1}
  #allocation0 [shape = 'u32[]', space=smem, size = 0x4, offset = 0x4, fixed_abs, tag = 'smem constant byte address 0x4 - core index']
  #allocation1 [shape = 'u32[72,128]{1,0:T(1,128)}', space=vmem, size = 0x9000, scoped, tag = 'internal scratch']
  %s0 = inlined_call_operand.vmem [shape: f32[2,18,18,4], index: 0, kind: input, shape index: {}]
  %s1 = inlined_call_operand.vmem [shape: f32[324,1], index: 1, kind: input, shape index: {}]
  %s2 = inlined_call_operand.vmem [shape: f32[4,24], index: 2, kind: input, shape index: {}]
  %s3 = inlined_call_operand.vmem [shape: f32[1,24], index: 3, kind: input, shape index: {}]
  %s4 = inlined_call_operand.vmem [shape: f32[9,24], index: 4, kind: input, shape index: {}]
  %s5 = inlined_call_operand.vmem [shape: f32[1,24], index: 5, kind: input, shape index: {}]
  %s6 = inlined_call_operand.vmem [shape: f32[24,8], index: 6, kind: input, shape index: {}]
  %s7 = inlined_call_operand.vmem [shape: f32[1,8], index: 7, kind: input, shape index: {}]
  %s8 = inlined_call_operand.vmem [shape: f32[2,8,8,8], index: 8, kind: output, shape index: {}]
  %s9 = sld [smem:[#allocation0]]
  $region65: #{linear_bottleneck_forward.1} parent=0
    _
  %s11 = ssub.s32 1, %s9
  %s12 = scalar_select 0, %s11, %s9
  loop: start=0, step=1, limit=4
  $region2: #{linear_bottleneck_forward.1} parent=0 // loop_pre_header
    _
  $region3: #{linear_bottleneck_forward.1} parent=0 // loop_header
    %s14 = sphi 0, %s18
    %p15 = scmp.ge.s32.totalorder %s14, 4
    %s24 = sphi 0, %s26
    %s27 = sphi 0, %s24
    %s28 = sphi 0, %s27
    %s44 = sphi 0, %s28
    %s48 = sphi 0, %s48
    %s50 = sphi 0, %s48
    %s51 = sphi 0, %s50
    %s65 = sphi 0, %s51
    %s69 = sphi 0, %s69
    %s71 = sphi 0, %s69
    %s72 = sphi 0, %s71
    %s86 = sphi 0, %s72
    %s90 = sphi 0, %s90
    %s92 = sphi 0, %s90
    %s93 = sphi 0, %s92
    %s107 = sphi 0, %s93
    %s111 = sphi 0, %s111
    %s113 = sphi 0, %s111
    %s114 = sphi 0, %s113
    %s128 = sphi 0, %s114
    %s132 = sphi 0, %s132
    %s134 = sphi 0, %s132
    %s135 = sphi 0, %s134
    %s149 = sphi 0, %s135
    %s153 = sphi 0, %s153
    %s155 = sphi 0, %s153
    %s156 = sphi 0, %s155
    %s170 = sphi 0, %s156
    %s174 = sphi 0, %s174
    %s176 = sphi 0, %s174
    %s177 = sphi 0, %s176
    %s191 = sphi 0, %s177
    %s197 = sphi 0, %s199
    %s200 = sphi 0, %s197
    %s201 = sphi 0, %s200
    %s217 = sphi 0, %s201
  $region4: #{linear_bottleneck_forward.1} parent=0 // loop_header_branch
    %17 = sbr.rel (%p15) target = $region8
  $region5: #{linear_bottleneck_forward.1} parent=0 // loop_body
    %s19 = ssub.s32 %s14, 1
    %s20 = ssub.s32 %s14, 2
    %s21 = sadd.s32 %s14, 1
    %s22 = ssub.s32 %s14, %s21
    %p23 = scmp.eq.s32.totalorder %s22, 0
    %s25 = sadd.s32 %s24, 1
    %s26 = scalar_select %p23, %s24, %s25
    %p29 = pneg %p23
    %p30 = scmp.eq.s32.totalorder %s14, 1
    %p31 = por %p29, %p30
    %p32 = scmp.ne.s32.totalorder %s24, %s27
    %p33 = scmp.eq.s32.totalorder %s14, 0
    %p34 = por %p32, %p33
    %p35 = scmp.ne.s32.totalorder %s24, %s27
    %p36 = scmp.eq.s32.totalorder %s19, 1
    %p37 = por %p35, %p36
    %p38 = scmp.ne.s32.totalorder %s27, %s28
    %p39 = scmp.eq.s32.totalorder %s19, 0
    %p40 = por %p38, %p39
    %p41 = scmp.ne.s32.totalorder %s27, %s28
    %p42 = scmp.eq.s32.totalorder %s20, 1
    %p43 = por %p41, %p42
    %p45 = scmp.ne.s32.totalorder %s28, %s44
    %p46 = scmp.eq.s32.totalorder %s20, 0
    %p47 = por %p45, %p46
    %s49 = sadd.s32 %s48, 1
    %p52 = scmp.eq.s32.totalorder %s14, 1
    %p53 = scmp.ne.s32.totalorder %s48, %s50
    %p54 = scmp.eq.s32.totalorder %s14, 0
    %p55 = por %p53, %p54
    %p56 = scmp.ne.s32.totalorder %s48, %s50
    %p57 = scmp.eq.s32.totalorder %s19, 1
    %p58 = por %p56, %p57
    %p59 = scmp.ne.s32.totalorder %s50, %s51
    %p60 = scmp.eq.s32.totalorder %s19, 0
    %p61 = por %p59, %p60
    %p62 = scmp.ne.s32.totalorder %s50, %s51
    %p63 = scmp.eq.s32.totalorder %s20, 1
    %p64 = por %p62, %p63
    %p66 = scmp.ne.s32.totalorder %s51, %s65
    %p67 = scmp.eq.s32.totalorder %s20, 0
    %p68 = por %p66, %p67
    %s70 = sadd.s32 %s69, 1
    %p73 = scmp.eq.s32.totalorder %s14, 1
    %p74 = scmp.ne.s32.totalorder %s69, %s71
    %p75 = scmp.eq.s32.totalorder %s14, 0
    %p76 = por %p74, %p75
    %p77 = scmp.ne.s32.totalorder %s69, %s71
    %p78 = scmp.eq.s32.totalorder %s19, 1
    %p79 = por %p77, %p78
    %p80 = scmp.ne.s32.totalorder %s71, %s72
    %p81 = scmp.eq.s32.totalorder %s19, 0
    %p82 = por %p80, %p81
    %p83 = scmp.ne.s32.totalorder %s71, %s72
    %p84 = scmp.eq.s32.totalorder %s20, 1
    %p85 = por %p83, %p84
    %p87 = scmp.ne.s32.totalorder %s72, %s86
    %p88 = scmp.eq.s32.totalorder %s20, 0
    %p89 = por %p87, %p88
    %s91 = sadd.s32 %s90, 1
    %p94 = scmp.eq.s32.totalorder %s14, 1
    %p95 = scmp.ne.s32.totalorder %s90, %s92
    %p96 = scmp.eq.s32.totalorder %s14, 0
    %p97 = por %p95, %p96
    %p98 = scmp.ne.s32.totalorder %s90, %s92
    %p99 = scmp.eq.s32.totalorder %s19, 1
    %p100 = por %p98, %p99
    %p101 = scmp.ne.s32.totalorder %s92, %s93
    %p102 = scmp.eq.s32.totalorder %s19, 0
    %p103 = por %p101, %p102
    %p104 = scmp.ne.s32.totalorder %s92, %s93
    %p105 = scmp.eq.s32.totalorder %s20, 1
    %p106 = por %p104, %p105
    %p108 = scmp.ne.s32.totalorder %s93, %s107
    %p109 = scmp.eq.s32.totalorder %s20, 0
    %p110 = por %p108, %p109
    %s112 = sadd.s32 %s111, 1
    %p115 = scmp.eq.s32.totalorder %s14, 1
    %p116 = scmp.ne.s32.totalorder %s111, %s113
    %p117 = scmp.eq.s32.totalorder %s14, 0
    %p118 = por %p116, %p117
    %p119 = scmp.ne.s32.totalorder %s111, %s113
    %p120 = scmp.eq.s32.totalorder %s19, 1
    %p121 = por %p119, %p120
    %p122 = scmp.ne.s32.totalorder %s113, %s114
    %p123 = scmp.eq.s32.totalorder %s19, 0
    %p124 = por %p122, %p123
    %p125 = scmp.ne.s32.totalorder %s113, %s114
    %p126 = scmp.eq.s32.totalorder %s20, 1
    %p127 = por %p125, %p126
    %p129 = scmp.ne.s32.totalorder %s114, %s128
    %p130 = scmp.eq.s32.totalorder %s20, 0
    %p131 = por %p129, %p130
    %s133 = sadd.s32 %s132, 1
    %p136 = scmp.eq.s32.totalorder %s14, 1
    %p137 = scmp.ne.s32.totalorder %s132, %s134
    %p138 = scmp.eq.s32.totalorder %s14, 0
    %p139 = por %p137, %p138
    %p140 = scmp.ne.s32.totalorder %s132, %s134
    %p141 = scmp.eq.s32.totalorder %s19, 1
    %p142 = por %p140, %p141
    %p143 = scmp.ne.s32.totalorder %s134, %s135
    %p144 = scmp.eq.s32.totalorder %s19, 0
    %p145 = por %p143, %p144
    %p146 = scmp.ne.s32.totalorder %s134, %s135
    %p147 = scmp.eq.s32.totalorder %s20, 1
    %p148 = por %p146, %p147
    %p150 = scmp.ne.s32.totalorder %s135, %s149
    %p151 = scmp.eq.s32.totalorder %s20, 0
    %p152 = por %p150, %p151
    %s154 = sadd.s32 %s153, 1
    %p157 = scmp.eq.s32.totalorder %s14, 1
    %p158 = scmp.ne.s32.totalorder %s153, %s155
    %p159 = scmp.eq.s32.totalorder %s14, 0
    %p160 = por %p158, %p159
    %p161 = scmp.ne.s32.totalorder %s153, %s155
    %p162 = scmp.eq.s32.totalorder %s19, 1
    %p163 = por %p161, %p162
    %p164 = scmp.ne.s32.totalorder %s155, %s156
    %p165 = scmp.eq.s32.totalorder %s19, 0
    %p166 = por %p164, %p165
    %p167 = scmp.ne.s32.totalorder %s155, %s156
    %p168 = scmp.eq.s32.totalorder %s20, 1
    %p169 = por %p167, %p168
    %p171 = scmp.ne.s32.totalorder %s156, %s170
    %p172 = scmp.eq.s32.totalorder %s20, 0
    %p173 = por %p171, %p172
    %s175 = sadd.s32 %s174, 1
    %p178 = scmp.eq.s32.totalorder %s14, 1
    %p179 = scmp.ne.s32.totalorder %s174, %s176
    %p180 = scmp.eq.s32.totalorder %s14, 0
    %p181 = por %p179, %p180
    %p182 = scmp.ne.s32.totalorder %s174, %s176
    %p183 = scmp.eq.s32.totalorder %s19, 1
    %p184 = por %p182, %p183
    %p185 = scmp.ne.s32.totalorder %s176, %s177
    %p186 = scmp.eq.s32.totalorder %s19, 0
    %p187 = por %p185, %p186
    %p188 = scmp.ne.s32.totalorder %s176, %s177
    %p189 = scmp.eq.s32.totalorder %s20, 1
    %p190 = por %p188, %p189
    %p192 = scmp.ne.s32.totalorder %s177, %s191
    %p193 = scmp.eq.s32.totalorder %s20, 0
    %p194 = por %p192, %p193
    %s195 = ssub.s32 %s14, %s21
    %p196 = scmp.eq.s32.totalorder %s195, 0
    %s198 = sadd.s32 %s197, 1
    %s199 = scalar_select %p196, %s197, %s198
    %p202 = pneg %p196
    %p203 = scmp.eq.s32.totalorder %s14, 1
    %p204 = por %p202, %p203
    %p205 = scmp.ne.s32.totalorder %s197, %s200
    %p206 = scmp.eq.s32.totalorder %s14, 0
    %p207 = por %p205, %p206
    %p208 = scmp.ne.s32.totalorder %s197, %s200
    %p209 = scmp.eq.s32.totalorder %s19, 1
    %p210 = por %p208, %p209
    %p211 = scmp.ne.s32.totalorder %s200, %s201
    %p212 = scmp.eq.s32.totalorder %s19, 0
    %p213 = por %p211, %p212
    %p214 = scmp.ne.s32.totalorder %s200, %s201
    %p215 = scmp.eq.s32.totalorder %s20, 1
    %p216 = por %p214, %p215
    %p218 = scmp.ne.s32.totalorder %s201, %s217
    %p219 = scmp.eq.s32.totalorder %s20, 0
    %p220 = por %p218, %p219
    %p221 = scmp.le.s32.totalorder 1, %s14
    %p222 = scmp.lt.s32.totalorder %s14, 3
    %p223 = pnand %p221, %p222
    %p224 = pneg %p223
    // Predicated region
    $region9: #{linear_bottleneck_forward.1} parent=5 // pred_check
      _
    $region10: #{linear_bottleneck_forward.1} parent=5 // pred_check_branch
      %226 = sbr.rel (%p223) target = $region12
    $region11: #{linear_bottleneck_forward.1} parent=5 // pred_region
      %s227 = ssub.s32 %s14, 1
      // Predicated region
      $region13: #{linear_bottleneck_forward.1} parent=11 // pred_check
        %p228 = pneg %p61
      $region14: #{linear_bottleneck_forward.1} parent=11 // pred_check_branch
        %230 = sbr.rel (%p228) target = $region16
      $region15: #{linear_bottleneck_forward.1} parent=11 // pred_region
        _
      $region16: #{linear_bottleneck_forward.1} parent=11 // pred_fallthru
        _
      // Predicated region
      $region17: #{linear_bottleneck_forward.1} parent=11 // pred_check
        %p231 = pneg %p82
      $region18: #{linear_bottleneck_forward.1} parent=11 // pred_check_branch
        %233 = sbr.rel (%p231) target = $region20
      $region19: #{linear_bottleneck_forward.1} parent=11 // pred_region
        _
      $region20: #{linear_bottleneck_forward.1} parent=11 // pred_fallthru
        _
      // Predicated region
      $region21: #{linear_bottleneck_forward.1} parent=11 // pred_check
        %p234 = pneg %p103
      $region22: #{linear_bottleneck_forward.1} parent=11 // pred_check_branch
        %236 = sbr.rel (%p234) target = $region24
      $region23: #{linear_bottleneck_forward.1} parent=11 // pred_region
        _
      $region24: #{linear_bottleneck_forward.1} parent=11 // pred_fallthru
        _
      // Predicated region
      $region25: #{linear_bottleneck_forward.1} parent=11 // pred_check
        %p237 = pneg %p124
      $region26: #{linear_bottleneck_forward.1} parent=11 // pred_check_branch
        %239 = sbr.rel (%p237) target = $region28
      $region27: #{linear_bottleneck_forward.1} parent=11 // pred_region
        _
      $region28: #{linear_bottleneck_forward.1} parent=11 // pred_fallthru
        _
      // Predicated region
      $region29: #{linear_bottleneck_forward.1} parent=11 // pred_check
        %p240 = pneg %p145
      $region30: #{linear_bottleneck_forward.1} parent=11 // pred_check_branch
        %242 = sbr.rel (%p240) target = $region32
      $region31: #{linear_bottleneck_forward.1} parent=11 // pred_region
        _
      $region32: #{linear_bottleneck_forward.1} parent=11 // pred_fallthru
        _
      // Predicated region
      $region33: #{linear_bottleneck_forward.1} parent=11 // pred_check
        %p243 = pneg %p166
      $region34: #{linear_bottleneck_forward.1} parent=11 // pred_check_branch
        %245 = sbr.rel (%p243) target = $region36
      $region35: #{linear_bottleneck_forward.1} parent=11 // pred_region
        _
      $region36: #{linear_bottleneck_forward.1} parent=11 // pred_fallthru
        _
      // Predicated region
      $region37: #{linear_bottleneck_forward.1} parent=11 // pred_check
        %p246 = pneg %p187
      $region38: #{linear_bottleneck_forward.1} parent=11 // pred_check_branch
        %248 = sbr.rel (%p246) target = $region40
      $region39: #{linear_bottleneck_forward.1} parent=11 // pred_region
        _
      $region40: #{linear_bottleneck_forward.1} parent=11 // pred_fallthru
        _
    $region12: #{linear_bottleneck_forward.1} parent=5 // pred_fallthru
      _
    %p249 = scmp.lt.s32.totalorder %s14, 2
    // Predicated region
    $region41: #{linear_bottleneck_forward.1} parent=5 // pred_check
      %p250 = pneg %p249
    $region42: #{linear_bottleneck_forward.1} parent=5 // pred_check_branch
      %252 = sbr.rel (%p250) target = $region44
    $region43: #{linear_bottleneck_forward.1} parent=5 // pred_region
      // Predicated region
      $region45: #{linear_bottleneck_forward.1} parent=43 // pred_check
        %p253 = pneg %p34
      $region46: #{linear_bottleneck_forward.1} parent=43 // pred_check_branch
        %255 = sbr.rel (%p253) target = $region48
      $region47: #{linear_bottleneck_forward.1} parent=43 // pred_region
        %p256 = scmp.lt.s32.totalorder %s14, 1
        %s257 = scalar_select %p256, %s14, 1
        %s258 = smul.addr %s257, 54
        %s259 = smul.addr %s258, 8
        %s260 = scalar_lea.vmem %s0, %s259
      $region48: #{linear_bottleneck_forward.1} parent=43 // pred_fallthru
        _
    $region44: #{linear_bottleneck_forward.1} parent=5 // pred_fallthru
      _
    %p261 = scmp.le.s32.totalorder 1, %s14
    %p262 = scmp.lt.s32.totalorder %s14, 3
    %p263 = pnand %p261, %p262
    %p264 = pneg %p263
    // Predicated region
    $region49: #{linear_bottleneck_forward.1} parent=5 // pred_check
      _
    $region50: #{linear_bottleneck_forward.1} parent=5 // pred_check_branch
      %266 = sbr.rel (%p263) target = $region52
    $region51: #{linear_bottleneck_forward.1} parent=5 // pred_region
      %s267 = ssub.s32 %s14, 1
      %p268 = scmp.lt.s32.totalorder %s19, 1
      %s269 = scalar_select %p268, %s19, 1
      %s270 = smul.addr %s269, 54
      %s271 = smul.addr %s270, 8
      %s272 = scalar_lea.vmem %s0, %s271
      %p273 = pneg %p40
      %p274 = pneg %p37
      %p275 = pneg %p61
      %p276 = pneg %p58
      %p277 = pneg %p82
      %p278 = pneg %p79
      %p279 = pneg %p103
      %p280 = pneg %p100
      %p281 = pneg %p124
      %p282 = pneg %p121
      %p283 = pneg %p145
      %p284 = pneg %p142
      %p285 = pneg %p166
      %p286 = pneg %p163
      %p287 = pneg %p187
      %p288 = pneg %p184
      %p289 = pneg %p213
      %p290 = pneg %p210
      %p291 = scmp.lt.s32.totalorder %s19, 1
      %s292 = scalar_select %p291, %s19, 1
      %s293 = smul.addr %s292, 8
      %s294 = smul.addr %s293, 8
      %s295 = scalar_lea.vmem %s8, %s294
      %p296 = scmp.lt.s32.totalorder %s19, 1
      %s297 = scalar_select %p296, %s19, 1
      %s298 = smul.addr %s297, 54
      %s299 = smul.addr %s298, 8
      %s300 = scalar_lea.vmem %s0, %s299
      %p301 = scmp.lt.s32.totalorder %s19, 1
      %s302 = scalar_select %p301, %s19, 1
      %s303 = smul.addr %s302, 8
      %s304 = smul.addr %s303, 8
      %s305 = scalar_lea.vmem %s8, %s304
      %v306 = vld [vmem:[%s300] sm:$0xff]
      %v307 = vld [vmem:[%s300 + $0x8] sm:$0xff]
      %v308 = vld [vmem:[%s300 + $0x10] sm:$0x3]
      %v309 = vld [vmem:[%s300 + $0x18] sm:$0xff]
      %v310 = vld [vmem:[%s300 + $0x20] sm:$0xff]
      %v311 = vld [vmem:[%s300 + $0x28] sm:$0x3]
      %v312 = vld [vmem:[%s300 + $0x30] sm:$0xff]
      %v313 = vld [vmem:[%s300 + $0x38] sm:$0xff]
      %v314 = vld [vmem:[%s300 + $0x40] sm:$0x3]
      %v315 = vld [vmem:[%s300 + $0x48] sm:$0xff]
      %v316 = vld [vmem:[%s300 + $0x50] sm:$0xff]
      %v317 = vld [vmem:[%s300 + $0x58] sm:$0x3]
      %v318 = vld [vmem:[%s300 + $0x60] sm:$0xff]
      %v319 = vld [vmem:[%s300 + $0x68] sm:$0xff]
      %v320 = vld [vmem:[%s300 + $0x70] sm:$0x3]
      %v321 = vld [vmem:[%s300 + $0x78] sm:$0xff]
      %v322 = vld [vmem:[%s300 + $0x80] sm:$0xff]
      %v323 = vld [vmem:[%s300 + $0x88] sm:$0x3]
      %v324 = vld [vmem:[%s300 + $0x90] sm:$0xff]
      %v325 = vld [vmem:[%s300 + $0x98] sm:$0xff]
      %v326 = vld [vmem:[%s300 + $0xa0] sm:$0x3]
      %v327 = vld [vmem:[%s300 + $0xa8] sm:$0xff]
      %v328 = vld [vmem:[%s300 + $0xb0] sm:$0xff]
      %v329 = vld [vmem:[%s300 + $0xb8] sm:$0x3]
      %v330 = vld [vmem:[%s300 + $0xc0] sm:$0xff]
      %v331 = vld [vmem:[%s300 + $0xc8] sm:$0xff]
      %v332 = vld [vmem:[%s300 + $0xd0] sm:$0x3]
      %v333 = vld [vmem:[%s300 + $0xd8] sm:$0xff]
      %v334 = vld [vmem:[%s300 + $0xe0] sm:$0xff]
      %v335 = vld [vmem:[%s300 + $0xe8] sm:$0x3]
      %v336 = vld [vmem:[%s300 + $0xf0] sm:$0xff]
      %v337 = vld [vmem:[%s300 + $0xf8] sm:$0xff]
      %v338 = vld [vmem:[%s300 + $0x100] sm:$0x3]
      %v339 = vld [vmem:[%s300 + $0x108] sm:$0xff]
      %v340 = vld [vmem:[%s300 + $0x110] sm:$0xff]
      %v341 = vld [vmem:[%s300 + $0x118] sm:$0x3]
      %v342 = vld [vmem:[%s300 + $0x120] sm:$0xff]
      %v343 = vld [vmem:[%s300 + $0x128] sm:$0xff]
      %v344 = vld [vmem:[%s300 + $0x130] sm:$0x3]
      %v345 = vld [vmem:[%s300 + $0x138] sm:$0xff]
      %v346 = vld [vmem:[%s300 + $0x140] sm:$0xff]
      %v347 = vld [vmem:[%s300 + $0x148] sm:$0x3]
      %v348 = vld [vmem:[%s300 + $0x150] sm:$0xff]
      %v349 = vld [vmem:[%s300 + $0x158] sm:$0xff]
      %v350 = vld [vmem:[%s300 + $0x160] sm:$0x3]
      %v351 = vld [vmem:[%s300 + $0x168] sm:$0xff]
      %v352 = vld [vmem:[%s300 + $0x170] sm:$0xff]
      %v353 = vld [vmem:[%s300 + $0x178] sm:$0x3]
      %v354 = vld [vmem:[%s300 + $0x180] sm:$0xff]
      %v355 = vld [vmem:[%s300 + $0x188] sm:$0xff]
      %v356 = vld [vmem:[%s300 + $0x190] sm:$0x3]
      %v357 = vld [vmem:[%s300 + $0x198] sm:$0xff]
      %v358 = vld [vmem:[%s300 + $0x1a0] sm:$0xff]
      %v359 = vld [vmem:[%s300 + $0x1a8] sm:$0x3]
      %v414 = vrot.slane %v306, 2
      %v415 = vrot.slane %v306, 4
      %v416 = vrot.slane %v306, 6
      %v417 = vrot.slane %v307, 2
      %v418 = vrot.slane %v307, 4
      %v419 = vrot.slane %v307, 6
      %v420 = vrot.slane %v309, 2
      %v421 = vrot.slane %v309, 4
      %v422 = vrot.slane %v309, 6
      %v423 = vrot.slane %v310, 2
      %v424 = vrot.slane %v310, 4
      %v425 = vrot.slane %v310, 6
      %v426 = vrot.slane %v312, 2
      %v427 = vrot.slane %v312, 4
      %v428 = vrot.slane %v312, 6
      %v429 = vrot.slane %v313, 2
      %v430 = vrot.slane %v313, 4
      %v431 = vrot.slane %v313, 6
      %v432 = vrot.slane %v315, 2
      %v433 = vrot.slane %v315, 4
      %v434 = vrot.slane %v315, 6
      %v435 = vrot.slane %v316, 2
      %v436 = vrot.slane %v316, 4
      %v437 = vrot.slane %v316, 6
      %v438 = vrot.slane %v318, 2
      %v439 = vrot.slane %v318, 4
      %v440 = vrot.slane %v318, 6
      %v441 = vrot.slane %v319, 2
      %v442 = vrot.slane %v319, 4
      %v443 = vrot.slane %v319, 6
      %v444 = vrot.slane %v321, 2
      %v445 = vrot.slane %v321, 4
      %v446 = vrot.slane %v321, 6
      %v447 = vrot.slane %v322, 2
      %v448 = vrot.slane %v322, 4
      %v449 = vrot.slane %v322, 6
      %v450 = vrot.slane %v324, 2
      %v451 = vrot.slane %v324, 4
      %v452 = vrot.slane %v324, 6
      %v453 = vrot.slane %v325, 2
      %v454 = vrot.slane %v325, 4
      %v455 = vrot.slane %v325, 6
      %v456 = vrot.slane %v327, 2
      %v457 = vrot.slane %v327, 4
      %v458 = vrot.slane %v327, 6
      %v459 = vrot.slane %v328, 2
      %v460 = vrot.slane %v328, 4
      %v461 = vrot.slane %v328, 6
      %v462 = vrot.slane %v330, 2
      %v463 = vrot.slane %v330, 4
      %v464 = vrot.slane %v330, 6
      %v465 = vrot.slane %v331, 2
      %v466 = vrot.slane %v331, 4
      %v467 = vrot.slane %v331, 6
      %v468 = vrot.slane %v333, 2
      %v469 = vrot.slane %v333, 4
      %v470 = vrot.slane %v333, 6
      %v471 = vrot.slane %v334, 2
      %v472 = vrot.slane %v334, 4
      %v473 = vrot.slane %v334, 6
      %v474 = vrot.slane %v336, 2
      %v475 = vrot.slane %v336, 4
      %v476 = vrot.slane %v336, 6
      %v477 = vrot.slane %v337, 2
      %v478 = vrot.slane %v337, 4
      %v479 = vrot.slane %v337, 6
      %v480 = vrot.slane %v339, 2
      %v481 = vrot.slane %v339, 4
      %v482 = vrot.slane %v339, 6
      %v483 = vrot.slane %v340, 2
      %v484 = vrot.slane %v340, 4
      %v485 = vrot.slane %v340, 6
      %v486 = vrot.slane %v342, 2
      %v487 = vrot.slane %v342, 4
      %v488 = vrot.slane %v342, 6
      %v489 = vrot.slane %v343, 2
      %v490 = vrot.slane %v343, 4
      %v491 = vrot.slane %v343, 6
      %v492 = vrot.slane %v345, 2
      %v493 = vrot.slane %v345, 4
      %v494 = vrot.slane %v345, 6
      %v495 = vrot.slane %v346, 2
      %v496 = vrot.slane %v346, 4
      %v497 = vrot.slane %v346, 6
      %v498 = vrot.slane %v348, 2
      %v499 = vrot.slane %v348, 4
      %v500 = vrot.slane %v348, 6
      %v501 = vrot.slane %v349, 2
      %v502 = vrot.slane %v349, 4
      %v503 = vrot.slane %v349, 6
      %v504 = vrot.slane %v351, 2
      %v505 = vrot.slane %v351, 4
      %v506 = vrot.slane %v351, 6
      %v507 = vrot.slane %v352, 2
      %v508 = vrot.slane %v352, 4
      %v509 = vrot.slane %v352, 6
      %v510 = vrot.slane %v354, 2
      %v511 = vrot.slane %v354, 4
      %v512 = vrot.slane %v354, 6
      %v513 = vrot.slane %v355, 2
      %v514 = vrot.slane %v355, 4
      %v515 = vrot.slane %v355, 6
      %v516 = vrot.slane %v357, 2
      %v517 = vrot.slane %v357, 4
      %v518 = vrot.slane %v357, 6
      %v519 = vrot.slane %v358, 2
      %v520 = vrot.slane %v358, 4
      %v521 = vrot.slane %v358, 6
      %v522 = vld [vmem:[%s2] sm:$0xf]
      %v523 = vld [vmem:[%s3] sm:$0x1]
      %v525 = vperm.slane %v523, 0
      %527 = vst [vmem:[#allocation1] ss:$4 sm:$0xff] %v306
      %s528 = scalar_lea.vmem [#allocation1], 1
      %529 = vst [vmem:[%s528] ss:$4 sm:$0xff] %v414
      %s530 = scalar_lea.vmem [#allocation1], 2
      %531 = vst [vmem:[%s530] ss:$4 sm:$0xff] %v415
      %s532 = scalar_lea.vmem [#allocation1], 3
      %533 = vst [vmem:[%s532] ss:$4 sm:$0xff] %v416
      %s534 = scalar_lea.vmem [#allocation1], 32
      %535 = vst [vmem:[%s534] ss:$4 sm:$0xff] %v307
      %s536 = scalar_lea.vmem [#allocation1], 33
      %537 = vst [vmem:[%s536] ss:$4 sm:$0xff] %v417
      %s538 = scalar_lea.vmem [#allocation1], 34
      %539 = vst [vmem:[%s538] ss:$4 sm:$0xff] %v418
      %s540 = scalar_lea.vmem [#allocation1], 35
      %541 = vst [vmem:[%s540] ss:$4 sm:$0xff] %v419
      %v542 = vld.sshfl [vmem:[#allocation1] sm:$0xff pattern:$0x73625140]
      %v543 = vld.sshfl [vmem:[#allocation1 + $0x20] sm:$0xff pattern:$0x73625140]
      %544 = vst [vmem:[#allocation1] ss:$4 sm:$0xff] %v308
      %545 = vst [vmem:[%s528] ss:$4 sm:$0xff] %v309
      %546 = vst [vmem:[%s530] ss:$4 sm:$0xff] %v420
      %547 = vst [vmem:[%s532] ss:$4 sm:$0xff] %v421
      %548 = vst [vmem:[%s534] ss:$4 sm:$0xff] %v422
      %549 = vst [vmem:[%s536] ss:$4 sm:$0xff] %v310
      %550 = vst [vmem:[%s538] ss:$4 sm:$0xff] %v423
      %551 = vst [vmem:[%s540] ss:$4 sm:$0xff] %v424
      %v552 = vld.sshfl [vmem:[#allocation1] sm:$0xff pattern:$0x73625140]
      %v553 = vld.sshfl [vmem:[#allocation1 + $0x20] sm:$0xff pattern:$0x73625140]
      %554 = vst [vmem:[#allocation1] ss:$4 sm:$0xff] %v425
      %555 = vst [vmem:[%s528] ss:$4 sm:$0xff] %v311
      %556 = vst [vmem:[%s530] ss:$4 sm:$0xff] %v312
      %557 = vst [vmem:[%s532] ss:$4 sm:$0xff] %v426
      %558 = vst [vmem:[%s534] ss:$4 sm:$0xff] %v427
      %559 = vst [vmem:[%s536] ss:$4 sm:$0xff] %v428
      %560 = vst [vmem:[%s538] ss:$4 sm:$0xff] %v313
      %561 = vst [vmem:[%s540] ss:$4 sm:$0xff] %v429
      %v562 = vld.sshfl [vmem:[#allocation1] sm:$0xff pattern:$0x73625140]
      %v563 = vld.sshfl [vmem:[#allocation1 + $0x20] sm:$0xff pattern:$0x73625140]
      %564 = vst [vmem:[#allocation1] ss:$4 sm:$0xff] %v430
      %565 = vst [vmem:[%s528] ss:$4 sm:$0xff] %v431
      %566 = vst [vmem:[%s530] ss:$4 sm:$0xff] %v314
      %567 = vst [vmem:[%s532] ss:$4 sm:$0xff] %v315
      %568 = vst [vmem:[%s534] ss:$4 sm:$0xff] %v432
      %569 = vst [vmem:[%s536] ss:$4 sm:$0xff] %v433
      %570 = vst [vmem:[%s538] ss:$4 sm:$0xff] %v434
      %571 = vst [vmem:[%s540] ss:$4 sm:$0xff] %v316
      %v572 = vld.sshfl [vmem:[#allocation1] sm:$0xff pattern:$0x73625140]
      %v573 = vld.sshfl [vmem:[#allocation1 + $0x20] sm:$0xff pattern:$0x73625140]
      %574 = vst [vmem:[#allocation1] ss:$4 sm:$0xff] %v435
      %575 = vst [vmem:[%s528] ss:$4 sm:$0xff] %v436
      %576 = vst [vmem:[%s530] ss:$4 sm:$0xff] %v437
      %577 = vst [vmem:[%s532] ss:$4 sm:$0xff] %v317
      %578 = vst [vmem:[%s534] ss:$4 sm:$0xff] %v318
      %579 = vst [vmem:[%s536] ss:$4 sm:$0xff] %v438
      %580 = vst [vmem:[%s538] ss:$4 sm:$0xff] %v439
      %581 = vst [vmem:[%s540] ss:$4 sm:$0xff] %v440
      %v582 = vld.sshfl [vmem:[#allocation1] sm:$0xff pattern:$0x73625140]
      %v583 = vld.sshfl [vmem:[#allocation1 + $0x20] sm:$0xff pattern:$0x73625140]
      %584 = vst [vmem:[#allocation1] ss:$4 sm:$0xff] %v319
      %585 = vst [vmem:[%s528] ss:$4 sm:$0xff] %v441
      %586 = vst [vmem:[%s530] ss:$4 sm:$0xff] %v442
      %587 = vst [vmem:[%s532] ss:$4 sm:$0xff] %v443
      %588 = vst [vmem:[%s534] ss:$4 sm:$0xff] %v320
      %589 = vst [vmem:[%s536] ss:$4 sm:$0xff] %v321
      %590 = vst [vmem:[%s538] ss:$4 sm:$0xff] %v444
      %591 = vst [vmem:[%s540] ss:$4 sm:$0xff] %v445
      %v592 = vld.sshfl [vmem:[#allocation1] sm:$0xff pattern:$0x73625140]
      %v593 = vld.sshfl [vmem:[#allocation1 + $0x20] sm:$0xff pattern:$0x73625140]
      %594 = vst [vmem:[#allocation1] ss:$4 sm:$0xff] %v446
      %595 = vst [vmem:[%s528] ss:$4 sm:$0xff] %v322
      %596 = vst [vmem:[%s530] ss:$4 sm:$0xff] %v447
      %597 = vst [vmem:[%s532] ss:$4 sm:$0xff] %v448
      %598 = vst [vmem:[%s534] ss:$4 sm:$0xff] %v449
      %599 = vst [vmem:[%s536] ss:$4 sm:$0xff] %v323
      %600 = vst [vmem:[%s538] ss:$4 sm:$0xff] %v324
      %601 = vst [vmem:[%s540] ss:$4 sm:$0xff] %v450
      %v602 = vld.sshfl [vmem:[#allocation1] sm:$0xff pattern:$0x73625140]
      %v603 = vld.sshfl [vmem:[#allocation1 + $0x20] sm:$0xff pattern:$0x73625140]
      %604 = vst [vmem:[#allocation1] ss:$4 sm:$0xff] %v451
      %605 = vst [vmem:[%s528] ss:$4 sm:$0xff] %v452
      %606 = vst [vmem:[%s530] ss:$4 sm:$0xff] %v325
      %607 = vst [vmem:[%s532] ss:$4 sm:$0xff] %v453
      %608 = vst [vmem:[%s534] ss:$4 sm:$0xff] %v454
      %609 = vst [vmem:[%s536] ss:$4 sm:$0xff] %v455
      %610 = vst [vmem:[%s538] ss:$4 sm:$0xff] %v326
      %611 = vst [vmem:[%s540] ss:$4 sm:$0xff] %v327
      %v612 = vld.sshfl [vmem:[#allocation1] sm:$0xff pattern:$0x73625140]
      %v613 = vld.sshfl [vmem:[#allocation1 + $0x20] sm:$0xff pattern:$0x73625140]
      %614 = vst [vmem:[#allocation1] ss:$4 sm:$0xff] %v456
      %615 = vst [vmem:[%s528] ss:$4 sm:$0xff] %v457
      %616 = vst [vmem:[%s530] ss:$4 sm:$0xff] %v458
      %617 = vst [vmem:[%s532] ss:$4 sm:$0xff] %v328
      %618 = vst [vmem:[%s534] ss:$4 sm:$0xff] %v459
      %619 = vst [vmem:[%s536] ss:$4 sm:$0xff] %v460
      %620 = vst [vmem:[%s538] ss:$4 sm:$0xff] %v461
      %621 = vst [vmem:[%s540] ss:$4 sm:$0xff] %v329
      %v622 = vld.sshfl [vmem:[#allocation1] sm:$0xff pattern:$0x73625140]
      %v623 = vld.sshfl [vmem:[#allocation1 + $0x20] sm:$0xff pattern:$0x73625140]
      %624 = vst [vmem:[#allocation1] ss:$4 sm:$0xff] %v330
      %625 = vst [vmem:[%s528] ss:$4 sm:$0xff] %v462
      %626 = vst [vmem:[%s530] ss:$4 sm:$0xff] %v463
      %627 = vst [vmem:[%s532] ss:$4 sm:$0xff] %v464
      %628 = vst [vmem:[%s534] ss:$4 sm:$0xff] %v331
      %629 = vst [vmem:[%s536] ss:$4 sm:$0xff] %v465
      %630 = vst [vmem:[%s538] ss:$4 sm:$0xff] %v466
      %631 = vst [vmem:[%s540] ss:$4 sm:$0xff] %v467
      %v632 = vld.sshfl [vmem:[#allocation1] sm:$0xff pattern:$0x73625140]
      %v633 = vld.sshfl [vmem:[#allocation1 + $0x20] sm:$0xff pattern:$0x73625140]
      %634 = vst [vmem:[#allocation1] ss:$4 sm:$0xff] %v332
      %635 = vst [vmem:[%s528] ss:$4 sm:$0xff] %v333
      %636 = vst [vmem:[%s530] ss:$4 sm:$0xff] %v468
      %637 = vst [vmem:[%s532] ss:$4 sm:$0xff] %v469
      %638 = vst [vmem:[%s534] ss:$4 sm:$0xff] %v470
      %639 = vst [vmem:[%s536] ss:$4 sm:$0xff] %v334
      %640 = vst [vmem:[%s538] ss:$4 sm:$0xff] %v471
      %641 = vst [vmem:[%s540] ss:$4 sm:$0xff] %v472
      %v642 = vld.sshfl [vmem:[#allocation1] sm:$0xff pattern:$0x73625140]
      %v643 = vld.sshfl [vmem:[#allocation1 + $0x20] sm:$0xff pattern:$0x73625140]
      %644 = vst [vmem:[#allocation1] ss:$4 sm:$0xff] %v473
      %645 = vst [vmem:[%s528] ss:$4 sm:$0xff] %v335
      %646 = vst [vmem:[%s530] ss:$4 sm:$0xff] %v336
      %647 = vst [vmem:[%s532] ss:$4 sm:$0xff] %v474
      %648 = vst [vmem:[%s534] ss:$4 sm:$0xff] %v475
      %649 = vst [vmem:[%s536] ss:$4 sm:$0xff] %v476
      %650 = vst [vmem:[%s538] ss:$4 sm:$0xff] %v337
      %651 = vst [vmem:[%s540] ss:$4 sm:$0xff] %v477
      %v652 = vld.sshfl [vmem:[#allocation1] sm:$0xff pattern:$0x73625140]
      %v653 = vld.sshfl [vmem:[#allocation1 + $0x20] sm:$0xff pattern:$0x73625140]
      %654 = vst [vmem:[#allocation1] ss:$4 sm:$0xff] %v478
      %655 = vst [vmem:[%s528] ss:$4 sm:$0xff] %v479
      %656 = vst [vmem:[%s530] ss:$4 sm:$0xff] %v338
      %657 = vst [vmem:[%s532] ss:$4 sm:$0xff] %v339
      %658 = vst [vmem:[%s534] ss:$4 sm:$0xff] %v480
      %659 = vst [vmem:[%s536] ss:$4 sm:$0xff] %v481
      %660 = vst [vmem:[%s538] ss:$4 sm:$0xff] %v482
      %661 = vst [vmem:[%s540] ss:$4 sm:$0xff] %v340
      %v662 = vld.sshfl [vmem:[#allocation1] sm:$0xff pattern:$0x73625140]
      %v663 = vld.sshfl [vmem:[#allocation1 + $0x20] sm:$0xff pattern:$0x73625140]
      %664 = vst [vmem:[#allocation1] ss:$4 sm:$0xff] %v483
      %665 = vst [vmem:[%s528] ss:$4 sm:$0xff] %v484
      %666 = vst [vmem:[%s530] ss:$4 sm:$0xff] %v485
      %667 = vst [vmem:[%s532] ss:$4 sm:$0xff] %v341
      %668 = vst [vmem:[%s534] ss:$4 sm:$0xff] %v342
      %669 = vst [vmem:[%s536] ss:$4 sm:$0xff] %v486
      %670 = vst [vmem:[%s538] ss:$4 sm:$0xff] %v487
      %671 = vst [vmem:[%s540] ss:$4 sm:$0xff] %v488
      %v672 = vld.sshfl [vmem:[#allocation1] sm:$0xff pattern:$0x73625140]
      %v673 = vld.sshfl [vmem:[#allocation1 + $0x20] sm:$0xff pattern:$0x73625140]
      %674 = vst [vmem:[#allocation1] ss:$4 sm:$0xff] %v343
      %675 = vst [vmem:[%s528] ss:$4 sm:$0xff] %v489
      %676 = vst [vmem:[%s530] ss:$4 sm:$0xff] %v490
      %677 = vst [vmem:[%s532] ss:$4 sm:$0xff] %v491
      %678 = vst [vmem:[%s534] ss:$4 sm:$0xff] %v344
      %679 = vst [vmem:[%s536] ss:$4 sm:$0xff] %v345
      %680 = vst [vmem:[%s538] ss:$4 sm:$0xff] %v492
      %681 = vst [vmem:[%s540] ss:$4 sm:$0xff] %v493
      %v682 = vld.sshfl [vmem:[#allocation1] sm:$0xff pattern:$0x73625140]
      %v683 = vld.sshfl [vmem:[#allocation1 + $0x20] sm:$0xff pattern:$0x73625140]
      %684 = vst [vmem:[#allocation1] ss:$4 sm:$0xff] %v494
      %685 = vst [vmem:[%s528] ss:$4 sm:$0xff] %v346
      %686 = vst [vmem:[%s530] ss:$4 sm:$0xff] %v495
      %687 = vst [vmem:[%s532] ss:$4 sm:$0xff] %v496
      %688 = vst [vmem:[%s534] ss:$4 sm:$0xff] %v497
      %689 = vst [vmem:[%s536] ss:$4 sm:$0xff] %v347
      %690 = vst [vmem:[%s538] ss:$4 sm:$0xff] %v348
      %691 = vst [vmem:[%s540] ss:$4 sm:$0xff] %v498
      %v692 = vld.sshfl [vmem:[#allocation1] sm:$0xff pattern:$0x73625140]
      %v693 = vld.sshfl [vmem:[#allocation1 + $0x20] sm:$0xff pattern:$0x73625140]
      %694 = vst [vmem:[#allocation1] ss:$4 sm:$0xff] %v499
      %695 = vst [vmem:[%s528] ss:$4 sm:$0xff] %v500
      %696 = vst [vmem:[%s530] ss:$4 sm:$0xff] %v349
      %697 = vst [vmem:[%s532] ss:$4 sm:$0xff] %v501
      %698 = vst [vmem:[%s534] ss:$4 sm:$0xff] %v502
      %699 = vst [vmem:[%s536] ss:$4 sm:$0xff] %v503
      %700 = vst [vmem:[%s538] ss:$4 sm:$0xff] %v350
      %701 = vst [vmem:[%s540] ss:$4 sm:$0xff] %v351
      %v702 = vld.sshfl [vmem:[#allocation1] sm:$0xff pattern:$0x73625140]
      %v703 = vld.sshfl [vmem:[#allocation1 + $0x20] sm:$0xff pattern:$0x73625140]
      %704 = vst [vmem:[#allocation1] ss:$4 sm:$0xff] %v504
      %705 = vst [vmem:[%s528] ss:$4 sm:$0xff] %v505
      %706 = vst [vmem:[%s530] ss:$4 sm:$0xff] %v506
      %707 = vst [vmem:[%s532] ss:$4 sm:$0xff] %v352
      %708 = vst [vmem:[%s534] ss:$4 sm:$0xff] %v507
      %709 = vst [vmem:[%s536] ss:$4 sm:$0xff] %v508
      %710 = vst [vmem:[%s538] ss:$4 sm:$0xff] %v509
      %711 = vst [vmem:[%s540] ss:$4 sm:$0xff] %v353
      %v712 = vld.sshfl [vmem:[#allocation1] sm:$0xff pattern:$0x73625140]
      %v713 = vld.sshfl [vmem:[#allocation1 + $0x20] sm:$0xff pattern:$0x73625140]
      %714 = vst [vmem:[#allocation1] ss:$4 sm:$0xff] %v354
      %715 = vst [vmem:[%s528] ss:$4 sm:$0xff] %v510
      %716 = vst [vmem:[%s530] ss:$4 sm:$0xff] %v511
      %717 = vst [vmem:[%s532] ss:$4 sm:$0xff] %v512
      %718 = vst [vmem:[%s534] ss:$4 sm:$0xff] %v355
      %719 = vst [vmem:[%s536] ss:$4 sm:$0xff] %v513
      %720 = vst [vmem:[%s538] ss:$4 sm:$0xff] %v514
      %721 = vst [vmem:[%s540] ss:$4 sm:$0xff] %v515
      %v722 = vld.sshfl [vmem:[#allocation1] sm:$0xff pattern:$0x73625140]
      %v723 = vld.sshfl [vmem:[#allocation1 + $0x20] sm:$0xff pattern:$0x73625140]
      %724 = vst [vmem:[#allocation1] ss:$4 sm:$0xff] %v356
      %725 = vst [vmem:[%s528] ss:$4 sm:$0xff] %v357
      %726 = vst [vmem:[%s530] ss:$4 sm:$0xff] %v516
      %727 = vst [vmem:[%s532] ss:$4 sm:$0xff] %v517
      %728 = vst [vmem:[%s534] ss:$4 sm:$0xff] %v518
      %729 = vst [vmem:[%s536] ss:$4 sm:$0xff] %v358
      %730 = vst [vmem:[%s538] ss:$4 sm:$0xff] %v519
      %731 = vst [vmem:[%s540] ss:$4 sm:$0xff] %v520
      %v732 = vld.sshfl [vmem:[#allocation1] sm:$0xff pattern:$0x73625140]
      %v733 = vld.sshfl [vmem:[#allocation1 + $0x20] sm:$0xff pattern:$0x73625140]
      %734 = vst [vmem:[#allocation1] ss:$4 sm:$0xff] %v521
      %735 = vst [vmem:[%s528] ss:$4 sm:$0xff] %v359
      %v736 = vld.sshfl [vmem:[#allocation1] sm:$0xff pattern:$0x73625140]
      %vm737 = vcmask 31744
      %v738 = vsel %vm737, %v542, 0
      %v740 = vsel %vm737, %v543, 0
      %v742 = vsel %vm737, %v552, 0
      %v744 = vsel %vm737, %v553, 0
      %v746 = vsel %vm737, %v562, 0
      %v748 = vsel %vm737, %v563, 0
      %v750 = vsel %vm737, %v572, 0
      %v752 = vsel %vm737, %v573, 0
      %v754 = vsel %vm737, %v582, 0
      %v756 = vsel %vm737, %v583, 0
      %v758 = vsel %vm737, %v592, 0
      %v760 = vsel %vm737, %v593, 0
      %v762 = vsel %vm737, %v602, 0
      %v764 = vsel %vm737, %v603, 0
      %v766 = vsel %vm737, %v612, 0
      %v768 = vsel %vm737, %v613, 0
      %v770 = vsel %vm737, %v622, 0
      %v772 = vsel %vm737, %v623, 0
      %v774 = vsel %vm737, %v632, 0
      %v776 = vsel %vm737, %v633, 0
      %v778 = vsel %vm737, %v642, 0
      %v780 = vsel %vm737, %v643, 0
      %v782 = vsel %vm737, %v652, 0
      %v784 = vsel %vm737, %v653, 0
      %v786 = vsel %vm737, %v662, 0
      %v788 = vsel %vm737, %v663, 0
      %v790 = vsel %vm737, %v672, 0
      %v792 = vsel %vm737, %v673, 0
      %v794 = vsel %vm737, %v682, 0
      %v796 = vsel %vm737, %v683, 0
      %v798 = vsel %vm737, %v692, 0
      %v800 = vsel %vm737, %v693, 0
      %v802 = vsel %vm737, %v702, 0
      %v804 = vsel %vm737, %v703, 0
      %v806 = vsel %vm737, %v712, 0
      %v808 = vsel %vm737, %v713, 0
      %v810 = vsel %vm737, %v722, 0
      %v812 = vsel %vm737, %v723, 0
      %v814 = vsel %vm737, %v732, 0
      %v816 = vsel %vm737, %v733, 0
      %v818 = vsel %vm737, %v736, 0
      %vm820 = vcmask 1043456
      %v822 = vsel %vm820, %v522, 0
      %824 = vmatpush.msra.mxu0 0.0
      %825 = vmatpush.msra.mxu0 0.0
      %826 = vmatpush.msra.mxu0 0.0
      %827 = vmatpush.msra.mxu0 0.0
      %828 = vmatpush.msra.mxu0 0.0
      %829 = vmatpush.msra.mxu0 0.0
      %830 = vmatpush.msra.mxu0 0.0
      %831 = vmatpush.msra.mxu0 0.0
      %832 = vmatpush.msra.mxu0 0.0
      %833 = vmatpush.msra.mxu0 0.0
      %834 = vmatpush.msra.mxu0 0.0
      %835 = vmatpush.msra.mxu0 0.0
      %836 = vmatpush.msra.mxu0 0.0
      %837 = vmatpush.msra.mxu0 0.0
      %838 = vmatpush.msra.mxu0 0.0
      %839 = vmatpush.msra.mxu0 %v822
      %840 = vmatmul.f32.gmra.mxu0 %v738
      %v841 = vpop.f32.mrf.mxu0
      %v842 = vadd.f32 %v525, %v841
      %843 = vmatmul.f32.gmra.mxu0 %v740
      %v844 = vpop.f32.mrf.mxu0
      %v845 = vadd.f32 %v525, %v844
      %846 = vmatmul.f32.gmra.mxu0 %v742
      %v847 = vpop.f32.mrf.mxu0
      %v848 = vadd.f32 %v525, %v847
      %849 = vmatmul.f32.gmra.mxu0 %v744
      %v850 = vpop.f32.mrf.mxu0
      %v851 = vadd.f32 %v525, %v850
      %852 = vmatmul.f32.gmra.mxu0 %v746
      %v853 = vpop.f32.mrf.mxu0
      %v854 = vadd.f32 %v525, %v853
      %855 = vmatmul.f32.gmra.mxu0 %v748
      %v856 = vpop.f32.mrf.mxu0
      %v857 = vadd.f32 %v525, %v856
      %858 = vmatmul.f32.gmra.mxu0 %v750
      %v859 = vpop.f32.mrf.mxu0
      %v860 = vadd.f32 %v525, %v859
      %861 = vmatmul.f32.gmra.mxu0 %v752
      %v862 = vpop.f32.mrf.mxu0
      %v863 = vadd.f32 %v525, %v862
      %864 = vmatmul.f32.gmra.mxu0 %v754
      %v865 = vpop.f32.mrf.mxu0
      %v866 = vadd.f32 %v525, %v865
      %867 = vmatmul.f32.gmra.mxu0 %v756
      %v868 = vpop.f32.mrf.mxu0
      %v869 = vadd.f32 %v525, %v868
      %870 = vmatmul.f32.gmra.mxu0 %v758
      %v871 = vpop.f32.mrf.mxu0
      %v872 = vadd.f32 %v525, %v871
      %873 = vmatmul.f32.gmra.mxu0 %v760
      %v874 = vpop.f32.mrf.mxu0
      %v875 = vadd.f32 %v525, %v874
      %876 = vmatmul.f32.gmra.mxu0 %v762
      %v877 = vpop.f32.mrf.mxu0
      %v878 = vadd.f32 %v525, %v877
      %879 = vmatmul.f32.gmra.mxu0 %v764
      %v880 = vpop.f32.mrf.mxu0
      %v881 = vadd.f32 %v525, %v880
      %882 = vmatmul.f32.gmra.mxu0 %v766
      %v883 = vpop.f32.mrf.mxu0
      %v884 = vadd.f32 %v525, %v883
      %885 = vmatmul.f32.gmra.mxu0 %v768
      %v886 = vpop.f32.mrf.mxu0
      %v887 = vadd.f32 %v525, %v886
      %888 = vmatmul.f32.gmra.mxu0 %v770
      %v889 = vpop.f32.mrf.mxu0
      %v890 = vadd.f32 %v525, %v889
      %891 = vmatmul.f32.gmra.mxu0 %v772
      %v892 = vpop.f32.mrf.mxu0
      %v893 = vadd.f32 %v525, %v892
      %894 = vmatmul.f32.gmra.mxu0 %v774
      %v895 = vpop.f32.mrf.mxu0
      %v896 = vadd.f32 %v525, %v895
      %897 = vmatmul.f32.gmra.mxu0 %v776
      %v898 = vpop.f32.mrf.mxu0
      %v899 = vadd.f32 %v525, %v898
      %900 = vmatmul.f32.gmra.mxu0 %v778
      %v901 = vpop.f32.mrf.mxu0
      %v902 = vadd.f32 %v525, %v901
      %903 = vmatmul.f32.gmra.mxu0 %v780
      %v904 = vpop.f32.mrf.mxu0
      %v905 = vadd.f32 %v525, %v904
      %906 = vmatmul.f32.gmra.mxu0 %v782
      %v907 = vpop.f32.mrf.mxu0
      %v908 = vadd.f32 %v525, %v907
      %909 = vmatmul.f32.gmra.mxu0 %v784
      %v910 = vpop.f32.mrf.mxu0
      %v911 = vadd.f32 %v525, %v910
      %912 = vmatmul.f32.gmra.mxu0 %v786
      %v913 = vpop.f32.mrf.mxu0
      %v914 = vadd.f32 %v525, %v913
      %915 = vmatmul.f32.gmra.mxu0 %v788
      %v916 = vpop.f32.mrf.mxu0
      %v917 = vadd.f32 %v525, %v916
      %918 = vmatmul.f32.gmra.mxu0 %v790
      %v919 = vpop.f32.mrf.mxu0
      %v920 = vadd.f32 %v525, %v919
      %921 = vmatmul.f32.gmra.mxu0 %v792
      %v922 = vpop.f32.mrf.mxu0
      %v923 = vadd.f32 %v525, %v922
      %924 = vmatmul.f32.gmra.mxu0 %v794
      %v925 = vpop.f32.mrf.mxu0
      %v926 = vadd.f32 %v525, %v925
      %927 = vmatmul.f32.gmra.mxu0 %v796
      %v928 = vpop.f32.mrf.mxu0
      %v929 = vadd.f32 %v525, %v928
      %930 = vmatmul.f32.gmra.mxu0 %v798
      %v931 = vpop.f32.mrf.mxu0
      %v932 = vadd.f32 %v525, %v931
      %933 = vmatmul.f32.gmra.mxu0 %v800
      %v934 = vpop.f32.mrf.mxu0
      %v935 = vadd.f32 %v525, %v934
      %936 = vmatmul.f32.gmra.mxu0 %v802
      %v937 = vpop.f32.mrf.mxu0
      %v938 = vadd.f32 %v525, %v937
      %939 = vmatmul.f32.gmra.mxu0 %v804
      %v940 = vpop.f32.mrf.mxu0
      %v941 = vadd.f32 %v525, %v940
      %942 = vmatmul.f32.gmra.mxu0 %v806
      %v943 = vpop.f32.mrf.mxu0
      %v944 = vadd.f32 %v525, %v943
      %945 = vmatmul.f32.gmra.mxu0 %v808
      %v946 = vpop.f32.mrf.mxu0
      %v947 = vadd.f32 %v525, %v946
      %948 = vmatmul.f32.gmra.mxu0 %v810
      %v949 = vpop.f32.mrf.mxu0
      %v950 = vadd.f32 %v525, %v949
      %951 = vmatmul.f32.gmra.mxu0 %v812
      %v952 = vpop.f32.mrf.mxu0
      %v953 = vadd.f32 %v525, %v952
      %954 = vmatmul.f32.gmra.mxu0 %v814
      %v955 = vpop.f32.mrf.mxu0
      %v956 = vadd.f32 %v525, %v955
      %957 = vmatmul.f32.gmra.mxu0 %v816
      %v958 = vpop.f32.mrf.mxu0
      %959 = vmatmul.f32.gmra.mxu0 %v818
      %v960 = vpop.f32.mrf.mxu0
      %961 = vdwg.mxu0
      %v962 = vmax.f32 %v842, 0.0
      %v963 = vmax.f32 %v845, 0.0
      %v964 = vmax.f32 %v848, 0.0
      %v965 = vmax.f32 %v851, 0.0
      %v966 = vmax.f32 %v854, 0.0
      %v967 = vmax.f32 %v857, 0.0
      %v968 = vmax.f32 %v860, 0.0
      %v969 = vmax.f32 %v863, 0.0
      %v970 = vmax.f32 %v866, 0.0
      %v971 = vmax.f32 %v869, 0.0
      %v972 = vmax.f32 %v872, 0.0
      %v973 = vmax.f32 %v875, 0.0
      %v974 = vmax.f32 %v878, 0.0
      %v975 = vmax.f32 %v881, 0.0
      %v976 = vmax.f32 %v884, 0.0
      %v977 = vmax.f32 %v887, 0.0
      %v978 = vmax.f32 %v890, 0.0
      %v979 = vmax.f32 %v893, 0.0
      %v980 = vmax.f32 %v896, 0.0
      %v981 = vmax.f32 %v899, 0.0
      %v982 = vmax.f32 %v902, 0.0
      %v983 = vmax.f32 %v905, 0.0
      %v984 = vmax.f32 %v908, 0.0
      %v985 = vmax.f32 %v911, 0.0
      %v986 = vmax.f32 %v914, 0.0
      %v987 = vmax.f32 %v917, 0.0
      %v988 = vmax.f32 %v920, 0.0
      %v989 = vmax.f32 %v923, 0.0
      %v990 = vmax.f32 %v926, 0.0
      %v991 = vmax.f32 %v929, 0.0
      %v992 = vmax.f32 %v932, 0.0
      %v993 = vmax.f32 %v935, 0.0
      %v994 = vmax.f32 %v938, 0.0
      %v995 = vmax.f32 %v941, 0.0
      %v996 = vmax.f32 %v944, 0.0
      %v997 = vmax.f32 %v947, 0.0
      %v998 = vmax.f32 %v950, 0.0
      %v999 = vmax.f32 %v953, 0.0
      %v1000 = vmax.f32 %v956, 0.0
      %v1001 = vld [vmem:[%s1] sm:$0xff]
      %v1002 = vld [vmem:[%s1 + $0x8] sm:$0xff]
      %v1003 = vld [vmem:[%s1 + $0x10] sm:$0xff]
      %v1004 = vld [vmem:[%s1 + $0x18] sm:$0xff]
      %v1005 = vld [vmem:[%s1 + $0x20] sm:$0xff]
      %v1006 = vld [vmem:[%s1 + $0x28] sm:$0xff]
      %v1007 = vld [vmem:[%s1 + $0x30] sm:$0xff]
      %v1008 = vld [vmem:[%s1 + $0x38] sm:$0xff]
      %v1009 = vld [vmem:[%s1 + $0x40] sm:$0xff]
      %v1010 = vld [vmem:[%s1 + $0x48] sm:$0xff]
      %v1011 = vld [vmem:[%s1 + $0x50] sm:$0xff]
      %v1012 = vld [vmem:[%s1 + $0x58] sm:$0xff]
      %v1013 = vld [vmem:[%s1 + $0x60] sm:$0xff]
      %v1014 = vld [vmem:[%s1 + $0x68] sm:$0xff]
      %v1015 = vld [vmem:[%s1 + $0x70] sm:$0xff]
      %v1016 = vld [vmem:[%s1 + $0x78] sm:$0xff]
      %v1017 = vld [vmem:[%s1 + $0x80] sm:$0xff]
      %v1018 = vld [vmem:[%s1 + $0x88] sm:$0xff]
      %v1019 = vld [vmem:[%s1 + $0x90] sm:$0xff]
      %v1020 = vld [vmem:[%s1 + $0x98] sm:$0xff]
      %v1021 = vld [vmem:[%s1 + $0xa0] sm:$0xff]
      %v1022 = vld [vmem:[%s1 + $0xa8] sm:$0xff]
      %v1023 = vld [vmem:[%s1 + $0xb0] sm:$0xff]
      %v1024 = vld [vmem:[%s1 + $0xb8] sm:$0xff]
      %v1025 = vld [vmem:[%s1 + $0xc0] sm:$0xff]
      %v1026 = vld [vmem:[%s1 + $0xc8] sm:$0xff]
      %v1027 = vld [vmem:[%s1 + $0xd0] sm:$0xff]
      %v1028 = vld [vmem:[%s1 + $0xd8] sm:$0xff]
      %v1029 = vld [vmem:[%s1 + $0xe0] sm:$0xff]
      %v1030 = vld [vmem:[%s1 + $0xe8] sm:$0xff]
      %v1031 = vld [vmem:[%s1 + $0xf0] sm:$0xff]
      %v1032 = vld [vmem:[%s1 + $0xf8] sm:$0xff]
      %v1033 = vld [vmem:[%s1 + $0x100] sm:$0xff]
      %v1034 = vld [vmem:[%s1 + $0x108] sm:$0xff]
      %v1035 = vld [vmem:[%s1 + $0x110] sm:$0xff]
      %v1036 = vld [vmem:[%s1 + $0x118] sm:$0xff]
      %v1037 = vld [vmem:[%s1 + $0x120] sm:$0xff]
      %v1038 = vld [vmem:[%s1 + $0x128] sm:$0xff]
      %v1039 = vld [vmem:[%s1 + $0x130] sm:$0xff]
      %1041 = vset.pattern.permute.xlu0 0
      %1042 = vperm.xlu0 %1041, %v1001
      %v1043 = vpop.permute.xlu0 %1042
      %1046 = vset.pattern.permute.xlu0 0
      %1047 = vperm.xlu0 %1046, %v1002
      %v1048 = vpop.permute.xlu0 %1047
      %1051 = vset.pattern.permute.xlu0 0
      %1052 = vperm.xlu0 %1051, %v1003
      %v1053 = vpop.permute.xlu0 %1052
      %1056 = vset.pattern.permute.xlu0 0
      %1057 = vperm.xlu0 %1056, %v1004
      %v1058 = vpop.permute.xlu0 %1057
      %1061 = vset.pattern.permute.xlu0 0
      %1062 = vperm.xlu0 %1061, %v1005
      %v1063 = vpop.permute.xlu0 %1062
      %1066 = vset.pattern.permute.xlu0 0
      %1067 = vperm.xlu0 %1066, %v1006
      %v1068 = vpop.permute.xlu0 %1067
      %1071 = vset.pattern.permute.xlu0 0
      %1072 = vperm.xlu0 %1071, %v1007
      %v1073 = vpop.permute.xlu0 %1072
      %1076 = vset.pattern.permute.xlu0 0
      %1077 = vperm.xlu0 %1076, %v1008
      %v1078 = vpop.permute.xlu0 %1077
      %1081 = vset.pattern.permute.xlu0 0
      %1082 = vperm.xlu0 %1081, %v1009
      %v1083 = vpop.permute.xlu0 %1082
      %1086 = vset.pattern.permute.xlu0 0
      %1087 = vperm.xlu0 %1086, %v1010
      %v1088 = vpop.permute.xlu0 %1087
      %1091 = vset.pattern.permute.xlu0 0
      %1092 = vperm.xlu0 %1091, %v1011
      %v1093 = vpop.permute.xlu0 %1092
      %1096 = vset.pattern.permute.xlu0 0
      %1097 = vperm.xlu0 %1096, %v1012
      %v1098 = vpop.permute.xlu0 %1097
      %1101 = vset.pattern.permute.xlu0 0
      %1102 = vperm.xlu0 %1101, %v1013
      %v1103 = vpop.permute.xlu0 %1102
      %1106 = vset.pattern.permute.xlu0 0
      %1107 = vperm.xlu0 %1106, %v1014
      %v1108 = vpop.permute.xlu0 %1107
      %1111 = vset.pattern.permute.xlu0 0
      %1112 = vperm.xlu0 %1111, %v1015
      %v1113 = vpop.permute.xlu0 %1112
      %1116 = vset.pattern.permute.xlu0 0
      %1117 = vperm.xlu0 %1116, %v1016
      %v1118 = vpop.permute.xlu0 %1117
      %1121 = vset.pattern.permute.xlu0 0
      %1122 = vperm.xlu0 %1121, %v1017
      %v1123 = vpop.permute.xlu0 %1122
      %1126 = vset.pattern.permute.xlu0 0
      %1127 = vperm.xlu0 %1126, %v1018
      %v1128 = vpop.permute.xlu0 %1127
      %1131 = vset.pattern.permute.xlu0 0
      %1132 = vperm.xlu0 %1131, %v1019
      %v1133 = vpop.permute.xlu0 %1132
      %1136 = vset.pattern.permute.xlu0 0
      %1137 = vperm.xlu0 %1136, %v1020
      %v1138 = vpop.permute.xlu0 %1137
      %1141 = vset.pattern.permute.xlu0 0
      %1142 = vperm.xlu0 %1141, %v1021
      %v1143 = vpop.permute.xlu0 %1142
      %1146 = vset.pattern.permute.xlu0 0
      %1147 = vperm.xlu0 %1146, %v1022
      %v1148 = vpop.permute.xlu0 %1147
      %1151 = vset.pattern.permute.xlu0 0
      %1152 = vperm.xlu0 %1151, %v1023
      %v1153 = vpop.permute.xlu0 %1152
      %1156 = vset.pattern.permute.xlu0 0
      %1157 = vperm.xlu0 %1156, %v1024
      %v1158 = vpop.permute.xlu0 %1157
      %1161 = vset.pattern.permute.xlu0 0
      %1162 = vperm.xlu0 %1161, %v1025
      %v1163 = vpop.permute.xlu0 %1162
      %1166 = vset.pattern.permute.xlu0 0
      %1167 = vperm.xlu0 %1166, %v1026
      %v1168 = vpop.permute.xlu0 %1167
      %1171 = vset.pattern.permute.xlu0 0
      %1172 = vperm.xlu0 %1171, %v1027
      %v1173 = vpop.permute.xlu0 %1172
      %1176 = vset.pattern.permute.xlu0 0
      %1177 = vperm.xlu0 %1176, %v1028
      %v1178 = vpop.permute.xlu0 %1177
      %1181 = vset.pattern.permute.xlu0 0
      %1182 = vperm.xlu0 %1181, %v1029
      %v1183 = vpop.permute.xlu0 %1182
      %1186 = vset.pattern.permute.xlu0 0
      %1187 = vperm.xlu0 %1186, %v1030
      %v1188 = vpop.permute.xlu0 %1187
      %1191 = vset.pattern.permute.xlu0 0
      %1192 = vperm.xlu0 %1191, %v1031
      %v1193 = vpop.permute.xlu0 %1192
      %1196 = vset.pattern.permute.xlu0 0
      %1197 = vperm.xlu0 %1196, %v1032
      %v1198 = vpop.permute.xlu0 %1197
      %1201 = vset.pattern.permute.xlu0 0
      %1202 = vperm.xlu0 %1201, %v1033
      %v1203 = vpop.permute.xlu0 %1202
      %1206 = vset.pattern.permute.xlu0 0
      %1207 = vperm.xlu0 %1206, %v1034
      %v1208 = vpop.permute.xlu0 %1207
      %1211 = vset.pattern.permute.xlu0 0
      %1212 = vperm.xlu0 %1211, %v1035
      %v1213 = vpop.permute.xlu0 %1212
      %1216 = vset.pattern.permute.xlu0 0
      %1217 = vperm.xlu0 %1216, %v1036
      %v1218 = vpop.permute.xlu0 %1217
      %1221 = vset.pattern.permute.xlu0 0
      %1222 = vperm.xlu0 %1221, %v1037
      %v1223 = vpop.permute.xlu0 %1222
      %1226 = vset.pattern.permute.xlu0 0
      %1227 = vperm.xlu0 %1226, %v1038
      %v1228 = vpop.permute.xlu0 %1227
      %1231 = vset.pattern.permute.xlu0 0
      %1232 = vperm.xlu0 %1231, %v1039
      %v1233 = vpop.permute.xlu0 %1232
      %v1235 = vmul.f32 %v962, %v1043
      %v1236 = vmul.f32 %v963, %v1048
      %v1237 = vmul.f32 %v964, %v1053
      %v1238 = vmul.f32 %v965, %v1058
      %v1239 = vmul.f32 %v966, %v1063
      %v1240 = vmul.f32 %v967, %v1068
      %v1241 = vmul.f32 %v968, %v1073
      %v1242 = vmul.f32 %v969, %v1078
      %v1243 = vmul.f32 %v970, %v1083
      %v1244 = vmul.f32 %v971, %v1088
      %v1245 = vmul.f32 %v972, %v1093
      %v1246 = vmul.f32 %v973, %v1098
      %v1247 = vmul.f32 %v974, %v1103
      %v1248 = vmul.f32 %v975, %v1108
      %v1249 = vmul.f32 %v976, %v1113
      %v1250 = vmul.f32 %v977, %v1118
      %v1251 = vmul.f32 %v978, %v1123
      %v1252 = vmul.f32 %v979, %v1128
      %v1253 = vmul.f32 %v980, %v1133
      %v1254 = vmul.f32 %v981, %v1138
      %v1255 = vmul.f32 %v982, %v1143
      %v1256 = vmul.f32 %v983, %v1148
      %v1257 = vmul.f32 %v984, %v1153
      %v1258 = vmul.f32 %v985, %v1158
      %v1259 = vmul.f32 %v986, %v1163
      %v1260 = vmul.f32 %v987, %v1168
      %v1261 = vmul.f32 %v988, %v1173
      %v1262 = vmul.f32 %v989, %v1178
      %v1263 = vmul.f32 %v990, %v1183
      %v1264 = vmul.f32 %v991, %v1188
      %v1265 = vmul.f32 %v992, %v1193
      %v1266 = vmul.f32 %v993, %v1198
      %v1267 = vmul.f32 %v994, %v1203
      %v1268 = vmul.f32 %v995, %v1208
      %v1269 = vmul.f32 %v996, %v1213
      %v1270 = vmul.f32 %v997, %v1218
      %v1271 = vmul.f32 %v998, %v1223
      %v1272 = vmul.f32 %v999, %v1228
      %v1273 = vmul.f32 %v1000, %v1233
      %v1312 = vrot.slane %v1235, 2
      %v1313 = vrot.slane %v1235, 4
      %v1314 = vrot.slane %v1235, 6
      %v1315 = vrot.slane %v1236, 2
      %v1316 = vrot.slane %v1236, 4
      %v1317 = vrot.slane %v1236, 6
      %v1318 = vrot.slane %v1237, 2
      %v1319 = vrot.slane %v1237, 4
      %v1320 = vrot.slane %v1237, 6
      %v1321 = vrot.slane %v1238, 2
      %v1322 = vrot.slane %v1238, 4
      %v1323 = vrot.slane %v1238, 6
      %v1324 = vrot.slane %v1239, 2
      %v1325 = vrot.slane %v1239, 4
      %v1326 = vrot.slane %v1239, 6
      %v1327 = vrot.slane %v1240, 2
      %v1328 = vrot.slane %v1240, 4
      %v1329 = vrot.slane %v1240, 6
      %v1330 = vrot.slane %v1241, 2
      %v1331 = vrot.slane %v1241, 4
      %v1332 = vrot.slane %v1241, 6
      %v1333 = vrot.slane %v1242, 2
      %v1334 = vrot.slane %v1242, 4
      %v1335 = vrot.slane %v1242, 6
      %v1336 = vrot.slane %v1243, 2
      %v1337 = vrot.slane %v1243, 4
      %v1338 = vrot.slane %v1243, 6
      %v1339 = vrot.slane %v1244, 2
      %v1340 = vrot.slane %v1244, 4
      %v1341 = vrot.slane %v1244, 6
      %v1342 = vrot.slane %v1245, 2
      %v1343 = vrot.slane %v1245, 4
      %v1344 = vrot.slane %v1245, 6
      %v1345 = vrot.slane %v1246, 2
      %v1346 = vrot.slane %v1246, 4
      %v1347 = vrot.slane %v1246, 6
      %v1348 = vrot.slane %v1247, 2
      %v1349 = vrot.slane %v1247, 4
      %v1350 = vrot.slane %v1247, 6
      %v1351 = vrot.slane %v1248, 2
      %v1352 = vrot.slane %v1248, 4
      %v1353 = vrot.slane %v1248, 6
      %v1354 = vrot.slane %v1249, 2
      %v1355 = vrot.slane %v1249, 4
      %v1356 = vrot.slane %v1249, 6
      %v1357 = vrot.slane %v1250, 2
      %v1358 = vrot.slane %v1250, 4
      %v1359 = vrot.slane %v1250, 6
      %v1360 = vrot.slane %v1251, 2
      %v1361 = vrot.slane %v1251, 4
      %v1362 = vrot.slane %v1251, 6
      %v1363 = vrot.slane %v1252, 2
      %v1364 = vrot.slane %v1252, 4
      %v1365 = vrot.slane %v1252, 6
      %v1366 = vrot.slane %v1253, 2
      %v1367 = vrot.slane %v1253, 4
      %v1368 = vrot.slane %v1253, 6
      %v1369 = vrot.slane %v1254, 2
      %v1370 = vrot.slane %v1254, 4
      %v1371 = vrot.slane %v1254, 6
      %v1372 = vrot.slane %v1255, 2
      %v1373 = vrot.slane %v1255, 4
      %v1374 = vrot.slane %v1255, 6
      %v1375 = vrot.slane %v1256, 2
      %v1376 = vrot.slane %v1256, 4
      %v1377 = vrot.slane %v1256, 6
      %v1378 = vrot.slane %v1257, 2
      %v1379 = vrot.slane %v1257, 4
      %v1380 = vrot.slane %v1257, 6
      %v1381 = vrot.slane %v1258, 2
      %v1382 = vrot.slane %v1258, 4
      %v1383 = vrot.slane %v1258, 6
      %v1384 = vrot.slane %v1259, 2
      %v1385 = vrot.slane %v1259, 4
      %v1386 = vrot.slane %v1259, 6
      %v1387 = vrot.slane %v1260, 2
      %v1388 = vrot.slane %v1260, 4
      %v1389 = vrot.slane %v1260, 6
      %v1390 = vrot.slane %v1261, 2
      %v1391 = vrot.slane %v1261, 4
      %v1392 = vrot.slane %v1261, 6
      %v1393 = vrot.slane %v1262, 2
      %v1394 = vrot.slane %v1262, 4
      %v1395 = vrot.slane %v1262, 6
      %v1396 = vrot.slane %v1263, 2
      %v1397 = vrot.slane %v1263, 4
      %v1398 = vrot.slane %v1263, 6
      %v1399 = vrot.slane %v1264, 2
      %v1400 = vrot.slane %v1264, 4
      %v1401 = vrot.slane %v1264, 6
      %v1402 = vrot.slane %v1265, 2
      %v1403 = vrot.slane %v1265, 4
      %v1404 = vrot.slane %v1265, 6
      %v1405 = vrot.slane %v1266, 2
      %v1406 = vrot.slane %v1266, 4
      %v1407 = vrot.slane %v1266, 6
      %v1408 = vrot.slane %v1267, 2
      %v1409 = vrot.slane %v1267, 4
      %v1410 = vrot.slane %v1267, 6
      %v1411 = vrot.slane %v1268, 2
      %v1412 = vrot.slane %v1268, 4
      %v1413 = vrot.slane %v1268, 6
      %v1414 = vrot.slane %v1269, 2
      %v1415 = vrot.slane %v1269, 4
      %v1416 = vrot.slane %v1269, 6
      %v1417 = vrot.slane %v1270, 2
      %v1418 = vrot.slane %v1270, 4
      %v1419 = vrot.slane %v1270, 6
      %v1420 = vrot.slane %v1271, 2
      %v1421 = vrot.slane %v1271, 4
      %v1422 = vrot.slane %v1271, 6
      %v1423 = vrot.slane %v1272, 2
      %v1424 = vrot.slane %v1272, 4
      %v1425 = vrot.slane %v1272, 6
      %v1540 = vld [vmem:[%s4] sm:$0x1]
      %v1541 = vperm.slane %v1540, 0
      %v1543 = vrot.slane %v1541, 2
      %v1544 = vrot.slane %v1541, 4
      %v1545 = vrot.slane %v1541, 6
      %v1549 = vmul.f32 %v1235, %v1541
      %v1550 = vmul.f32 %v1312, %v1543
      %v1551 = vmul.f32 %v1313, %v1544
      %v1552 = vmul.f32 %v1314, %v1545
      %v1553 = vmul.f32 %v1318, %v1541
      %v1554 = vmul.f32 %v1319, %v1543
      %v1555 = vmul.f32 %v1320, %v1544
      %v1556 = vmul.f32 %v1238, %v1545
      %v1557 = vmul.f32 %v1325, %v1541
      %v1558 = vmul.f32 %v1326, %v1543
      %v1559 = vmul.f32 %v1240, %v1544
      %v1560 = vmul.f32 %v1327, %v1545
      %v1561 = vmul.f32 %v1332, %v1541
      %v1562 = vmul.f32 %v1242, %v1543
      %v1563 = vmul.f32 %v1333, %v1544
      %v1564 = vmul.f32 %v1334, %v1545
      %v1565 = vmul.f32 %v1244, %v1541
      %v1566 = vmul.f32 %v1339, %v1543
      %v1567 = vmul.f32 %v1340, %v1544
      %v1568 = vmul.f32 %v1341, %v1545
      %v1569 = vmul.f32 %v1345, %v1541
      %v1570 = vmul.f32 %v1346, %v1543
      %v1571 = vmul.f32 %v1347, %v1544
      %v1572 = vmul.f32 %v1247, %v1545
      %v1573 = vmul.f32 %v1352, %v1541
      %v1574 = vmul.f32 %v1353, %v1543
      %v1575 = vmul.f32 %v1249, %v1544
      %v1576 = vmul.f32 %v1354, %v1545
      %v1577 = vmul.f32 %v1359, %v1541
      %v1578 = vmul.f32 %v1251, %v1543
      %v1579 = vmul.f32 %v1360, %v1544
      %v1580 = vmul.f32 %v1361, %v1545
      %v1581 = vadd.f32 %v1549, 0.0
      %v1582 = vadd.f32 %v1550, 0.0
      %v1583 = vadd.f32 %v1551, 0.0
      %v1584 = vadd.f32 %v1552, 0.0
      %v1585 = vadd.f32 %v1553, 0.0
      %v1586 = vadd.f32 %v1554, 0.0
      %v1587 = vadd.f32 %v1555, 0.0
      %v1588 = vadd.f32 %v1556, 0.0
      %v1589 = vadd.f32 %v1557, 0.0
      %v1590 = vadd.f32 %v1558, 0.0
      %v1591 = vadd.f32 %v1559, 0.0
      %v1592 = vadd.f32 %v1560, 0.0
      %v1593 = vadd.f32 %v1561, 0.0
      %v1594 = vadd.f32 %v1562, 0.0
      %v1595 = vadd.f32 %v1563, 0.0
      %v1596 = vadd.f32 %v1564, 0.0
      %v1597 = vadd.f32 %v1565, 0.0
      %v1598 = vadd.f32 %v1566, 0.0
      %v1599 = vadd.f32 %v1567, 0.0
      %v1600 = vadd.f32 %v1568, 0.0
      %v1601 = vadd.f32 %v1569, 0.0
      %v1602 = vadd.f32 %v1570, 0.0
      %v1603 = vadd.f32 %v1571, 0.0
      %v1604 = vadd.f32 %v1572, 0.0
      %v1605 = vadd.f32 %v1573, 0.0
      %v1606 = vadd.f32 %v1574, 0.0
      %v1607 = vadd.f32 %v1575, 0.0
      %v1608 = vadd.f32 %v1576, 0.0
      %v1609 = vadd.f32 %v1577, 0.0
      %v1610 = vadd.f32 %v1578, 0.0
      %v1611 = vadd.f32 %v1579, 0.0
      %v1612 = vadd.f32 %v1580, 0.0
      %v1613 = vld [vmem:[%s4 + $0x1] sm:$0x1]
      %v1614 = vperm.slane %v1613, 0
      %v1616 = vrot.slane %v1614, 2
      %v1617 = vrot.slane %v1614, 4
      %v1618 = vrot.slane %v1614, 6
      %vm1619 = vcmask 1040384
      %vm1620 = vcmask 1042434
      %vm1621 = vmor %vm1619, %vm1620
      %vm1622 = vcmask 1044484
      %vm1623 = vmor %vm1621, %vm1622
      %vm1624 = vcmask 1046534
      %vm1625 = vmor %vm1623, %vm1624
      %v1626 = vrot.slane %v1614, 7
      %v1627 = vrot.slane %v1626, 2
      %v1628 = vrot.slane %v1616, 7
      %v1629 = vsel %vm1625, %v1627, %v1628
      %v1630 = vrot.slane %v1628, 2
      %v1631 = vrot.slane %v1617, 7
      %v1632 = vsel %vm1625, %v1630, %v1631
      %v1633 = vrot.slane %v1631, 2
      %v1634 = vrot.slane %v1618, 7
      %v1635 = vsel %vm1625, %v1633, %v1634
      %v1636 = vrot.slane %v1634, 2
      %v1642 = vmul.f32 %v1236, %v1626
      %v1643 = vmul.f32 %v1315, %v1629
      %v1644 = vmul.f32 %v1316, %v1632
      %v1645 = vmul.f32 %v1317, %v1635
      %v1646 = vmul.f32 %v1237, %v1636
      %v1647 = vmul.f32 %v1321, %v1626
      %v1648 = vmul.f32 %v1322, %v1629
      %v1649 = vmul.f32 %v1323, %v1632
      %v1650 = vmul.f32 %v1239, %v1635
      %v1651 = vmul.f32 %v1324, %v1636
      %v1652 = vmul.f32 %v1328, %v1626
      %v1653 = vmul.f32 %v1329, %v1629
      %v1654 = vmul.f32 %v1241, %v1632
      %v1655 = vmul.f32 %v1330, %v1635
      %v1656 = vmul.f32 %v1331, %v1636
      %v1657 = vmul.f32 %v1335, %v1626
      %v1658 = vmul.f32 %v1243, %v1629
      %v1659 = vmul.f32 %v1336, %v1632
      %v1660 = vmul.f32 %v1337, %v1635
      %v1661 = vmul.f32 %v1338, %v1636
      %v1662 = vmul.f32 %v1245, %v1626
      %v1663 = vmul.f32 %v1342, %v1629
      %v1664 = vmul.f32 %v1343, %v1632
      %v1665 = vmul.f32 %v1344, %v1635
      %v1666 = vmul.f32 %v1246, %v1636
      %v1667 = vmul.f32 %v1348, %v1626
      %v1668 = vmul.f32 %v1349, %v1629
      %v1669 = vmul.f32 %v1350, %v1632
      %v1670 = vmul.f32 %v1248, %v1635
      %v1671 = vmul.f32 %v1351, %v1636
      %v1672 = vmul.f32 %v1355, %v1626
      %v1673 = vmul.f32 %v1356, %v1629
      %v1674 = vmul.f32 %v1250, %v1632
      %v1675 = vmul.f32 %v1357, %v1635
      %v1676 = vmul.f32 %v1358, %v1636
      %v1677 = vmul.f32 %v1362, %v1626
      %v1678 = vmul.f32 %v1252, %v1629
      %v1679 = vmul.f32 %v1363, %v1632
      %v1680 = vmul.f32 %v1364, %v1635
      %v1681 = vmul.f32 %v1365, %v1636
      %v1722 = vrot.slane %v1642, 7
      %v1723 = vrot.slane %v1722, 2
      %v1724 = vrot.slane %v1643, 7
      %v1725 = vsel %vm1625, %v1723, %v1724
      %v1726 = vrot.slane %v1724, 2
      %v1727 = vrot.slane %v1644, 7
      %v1728 = vsel %vm1625, %v1726, %v1727
      %v1729 = vrot.slane %v1727, 2
      %v1730 = vrot.slane %v1645, 7
      %v1731 = vsel %vm1625, %v1729, %v1730
      %v1732 = vrot.slane %v1730, 2
      %v1733 = vrot.slane %v1646, 7
      %v1734 = vsel %vm1625, %v1732, %v1733
      %v1735 = vrot.slane %v1647, 7
      %v1736 = vrot.slane %v1735, 2
      %v1737 = vrot.slane %v1648, 7
      %v1738 = vsel %vm1625, %v1736, %v1737
      %v1739 = vrot.slane %v1737, 2
      %v1740 = vrot.slane %v1649, 7
      %v1741 = vsel %vm1625, %v1739, %v1740
      %v1742 = vrot.slane %v1740, 2
      %v1743 = vrot.slane %v1650, 7
      %v1744 = vsel %vm1625, %v1742, %v1743
      %v1745 = vrot.slane %v1743, 2
      %v1746 = vrot.slane %v1651, 7
      %v1747 = vsel %vm1625, %v1745, %v1746
      %v1748 = vrot.slane %v1652, 7
      %v1749 = vrot.slane %v1748, 2
      %v1750 = vrot.slane %v1653, 7
      %v1751 = vsel %vm1625, %v1749, %v1750
      %v1752 = vrot.slane %v1750, 2
      %v1753 = vrot.slane %v1654, 7
      %v1754 = vsel %vm1625, %v1752, %v1753
      %v1755 = vrot.slane %v1753, 2
      %v1756 = vrot.slane %v1655, 7
      %v1757 = vsel %vm1625, %v1755, %v1756
      %v1758 = vrot.slane %v1756, 2
      %v1759 = vrot.slane %v1656, 7
      %v1760 = vsel %vm1625, %v1758, %v1759
      %v1761 = vrot.slane %v1657, 7
      %v1762 = vrot.slane %v1761, 2
      %v1763 = vrot.slane %v1658, 7
      %v1764 = vsel %vm1625, %v1762, %v1763
      %v1765 = vrot.slane %v1763, 2
      %v1766 = vrot.slane %v1659, 7
      %v1767 = vsel %vm1625, %v1765, %v1766
      %v1768 = vrot.slane %v1766, 2
      %v1769 = vrot.slane %v1660, 7
      %v1770 = vsel %vm1625, %v1768, %v1769
      %v1771 = vrot.slane %v1769, 2
      %v1772 = vrot.slane %v1661, 7
      %v1773 = vsel %vm1625, %v1771, %v1772
      %v1774 = vrot.slane %v1662, 7
      %v1775 = vrot.slane %v1774, 2
      %v1776 = vrot.slane %v1663, 7
      %v1777 = vsel %vm1625, %v1775, %v1776
      %v1778 = vrot.slane %v1776, 2
      %v1779 = vrot.slane %v1664, 7
      %v1780 = vsel %vm1625, %v1778, %v1779
      %v1781 = vrot.slane %v1779, 2
      %v1782 = vrot.slane %v1665, 7
      %v1783 = vsel %vm1625, %v1781, %v1782
      %v1784 = vrot.slane %v1782, 2
      %v1785 = vrot.slane %v1666, 7
      %v1786 = vsel %vm1625, %v1784, %v1785
      %v1787 = vrot.slane %v1667, 7
      %v1788 = vrot.slane %v1787, 2
      %v1789 = vrot.slane %v1668, 7
      %v1790 = vsel %vm1625, %v1788, %v1789
      %v1791 = vrot.slane %v1789, 2
      %v1792 = vrot.slane %v1669, 7
      %v1793 = vsel %vm1625, %v1791, %v1792
      %v1794 = vrot.slane %v1792, 2
      %v1795 = vrot.slane %v1670, 7
      %v1796 = vsel %vm1625, %v1794, %v1795
      %v1797 = vrot.slane %v1795, 2
      %v1798 = vrot.slane %v1671, 7
      %v1799 = vsel %vm1625, %v1797, %v1798
      %v1800 = vrot.slane %v1672, 7
      %v1801 = vrot.slane %v1800, 2
      %v1802 = vrot.slane %v1673, 7
      %v1803 = vsel %vm1625, %v1801, %v1802
      %v1804 = vrot.slane %v1802, 2
      %v1805 = vrot.slane %v1674, 7
      %v1806 = vsel %vm1625, %v1804, %v1805
      %v1807 = vrot.slane %v1805, 2
      %v1808 = vrot.slane %v1675, 7
      %v1809 = vsel %vm1625, %v1807, %v1808
      %v1810 = vrot.slane %v1808, 2
      %v1811 = vrot.slane %v1676, 7
      %v1812 = vsel %vm1625, %v1810, %v1811
      %v1813 = vrot.slane %v1677, 7
      %v1814 = vrot.slane %v1813, 2
      %v1815 = vrot.slane %v1678, 7
      %v1816 = vsel %vm1625, %v1814, %v1815
      %v1817 = vrot.slane %v1815, 2
      %v1818 = vrot.slane %v1679, 7
      %v1819 = vsel %vm1625, %v1817, %v1818
      %v1820 = vrot.slane %v1818, 2
      %v1821 = vrot.slane %v1680, 7
      %v1822 = vsel %vm1625, %v1820, %v1821
      %v1823 = vrot.slane %v1821, 2
      %v1824 = vrot.slane %v1681, 7
      %v1825 = vsel %vm1625, %v1823, %v1824
      %v1858 = vadd.f32 %v1581, %v1725
      %v1859 = vadd.f32 %v1582, %v1728
      %v1860 = vadd.f32 %v1583, %v1731
      %v1861 = vadd.f32 %v1584, %v1734
      %v1862 = vadd.f32 %v1585, %v1738
      %v1863 = vadd.f32 %v1586, %v1741
      %v1864 = vadd.f32 %v1587, %v1744
      %v1865 = vadd.f32 %v1588, %v1747
      %v1866 = vadd.f32 %v1589, %v1751
      %v1867 = vadd.f32 %v1590, %v1754
      %v1868 = vadd.f32 %v1591, %v1757
      %v1869 = vadd.f32 %v1592, %v1760
      %v1870 = vadd.f32 %v1593, %v1764
      %v1871 = vadd.f32 %v1594, %v1767
      %v1872 = vadd.f32 %v1595, %v1770
      %v1873 = vadd.f32 %v1596, %v1773
      %v1874 = vadd.f32 %v1597, %v1777
      %v1875 = vadd.f32 %v1598, %v1780
      %v1876 = vadd.f32 %v1599, %v1783
      %v1877 = vadd.f32 %v1600, %v1786
      %v1878 = vadd.f32 %v1601, %v1790
      %v1879 = vadd.f32 %v1602, %v1793
      %v1880 = vadd.f32 %v1603, %v1796
      %v1881 = vadd.f32 %v1604, %v1799
      %v1882 = vadd.f32 %v1605, %v1803
      %v1883 = vadd.f32 %v1606, %v1806
      %v1884 = vadd.f32 %v1607, %v1809
      %v1885 = vadd.f32 %v1608, %v1812
      %v1886 = vadd.f32 %v1609, %v1816
      %v1887 = vadd.f32 %v1610, %v1819
      %v1888 = vadd.f32 %v1611, %v1822
      %v1889 = vadd.f32 %v1612, %v1825
      %v1890 = vld [vmem:[%s4 + $0x2] sm:$0x1]
      %v1891 = vperm.slane %v1890, 0
      %v1893 = vrot.slane %v1891, 2
      %v1894 = vrot.slane %v1891, 4
      %v1895 = vrot.slane %v1891, 6
      %v1896 = vrot.slane %v1891, 7
      %v1897 = vrot.slane %v1896, 2
      %v1898 = vrot.slane %v1893, 7
      %v1899 = vsel %vm1625, %v1897, %v1898
      %v1900 = vrot.slane %v1898, 2
      %v1901 = vrot.slane %v1894, 7
      %v1902 = vsel %vm1625, %v1900, %v1901
      %v1903 = vrot.slane %v1901, 2
      %v1904 = vrot.slane %v1895, 7
      %v1905 = vsel %vm1625, %v1903, %v1904
      %v1906 = vrot.slane %v1904, 2
      %v1912 = vmul.f32 %v1235, %v1896
      %v1913 = vmul.f32 %v1312, %v1899
      %v1914 = vmul.f32 %v1313, %v1902
      %v1915 = vmul.f32 %v1314, %v1905
      %v1916 = vmul.f32 %v1236, %v1906
      %v1917 = vmul.f32 %v1318, %v1896
      %v1918 = vmul.f32 %v1319, %v1899
      %v1919 = vmul.f32 %v1320, %v1902
      %v1920 = vmul.f32 %v1238, %v1905
      %v1921 = vmul.f32 %v1321, %v1906
      %v1922 = vmul.f32 %v1325, %v1896
      %v1923 = vmul.f32 %v1326, %v1899
      %v1924 = vmul.f32 %v1240, %v1902
      %v1925 = vmul.f32 %v1327, %v1905
      %v1926 = vmul.f32 %v1328, %v1906
      %v1927 = vmul.f32 %v1332, %v1896
      %v1928 = vmul.f32 %v1242, %v1899
      %v1929 = vmul.f32 %v1333, %v1902
      %v1930 = vmul.f32 %v1334, %v1905
      %v1931 = vmul.f32 %v1335, %v1906
      %v1932 = vmul.f32 %v1244, %v1896
      %v1933 = vmul.f32 %v1339, %v1899
      %v1934 = vmul.f32 %v1340, %v1902
      %v1935 = vmul.f32 %v1341, %v1905
      %v1936 = vmul.f32 %v1245, %v1906
      %v1937 = vmul.f32 %v1345, %v1896
      %v1938 = vmul.f32 %v1346, %v1899
      %v1939 = vmul.f32 %v1347, %v1902
      %v1940 = vmul.f32 %v1247, %v1905
      %v1941 = vmul.f32 %v1348, %v1906
      %v1942 = vmul.f32 %v1352, %v1896
      %v1943 = vmul.f32 %v1353, %v1899
      %v1944 = vmul.f32 %v1249, %v1902
      %v1945 = vmul.f32 %v1354, %v1905
      %v1946 = vmul.f32 %v1355, %v1906
      %v1947 = vmul.f32 %v1359, %v1896
      %v1948 = vmul.f32 %v1251, %v1899
      %v1949 = vmul.f32 %v1360, %v1902
      %v1950 = vmul.f32 %v1361, %v1905
      %v1951 = vmul.f32 %v1362, %v1906
      %v1992 = vrot.slane %v1912, 7
      %v1993 = vrot.slane %v1992, 2
      %v1994 = vrot.slane %v1913, 7
      %v1995 = vsel %vm1625, %v1993, %v1994
      %v1996 = vrot.slane %v1994, 2
      %v1997 = vrot.slane %v1914, 7
      %v1998 = vsel %vm1625, %v1996, %v1997
      %v1999 = vrot.slane %v1997, 2
      %v2000 = vrot.slane %v1915, 7
      %v2001 = vsel %vm1625, %v1999, %v2000
      %v2002 = vrot.slane %v2000, 2
      %v2003 = vrot.slane %v1916, 7
      %v2004 = vsel %vm1625, %v2002, %v2003
      %v2005 = vrot.slane %v1917, 7
      %v2006 = vrot.slane %v2005, 2
      %v2007 = vrot.slane %v1918, 7
      %v2008 = vsel %vm1625, %v2006, %v2007
      %v2009 = vrot.slane %v2007, 2
      %v2010 = vrot.slane %v1919, 7
      %v2011 = vsel %vm1625, %v2009, %v2010
      %v2012 = vrot.slane %v2010, 2
      %v2013 = vrot.slane %v1920, 7
      %v2014 = vsel %vm1625, %v2012, %v2013
      %v2015 = vrot.slane %v2013, 2
      %v2016 = vrot.slane %v1921, 7
      %v2017 = vsel %vm1625, %v2015, %v2016
      %v2018 = vrot.slane %v1922, 7
      %v2019 = vrot.slane %v2018, 2
      %v2020 = vrot.slane %v1923, 7
      %v2021 = vsel %vm1625, %v2019, %v2020
      %v2022 = vrot.slane %v2020, 2
      %v2023 = vrot.slane %v1924, 7
      %v2024 = vsel %vm1625, %v2022, %v2023
      %v2025 = vrot.slane %v2023, 2
      %v2026 = vrot.slane %v1925, 7
      %v2027 = vsel %vm1625, %v2025, %v2026
      %v2028 = vrot.slane %v2026, 2
      %v2029 = vrot.slane %v1926, 7
      %v2030 = vsel %vm1625, %v2028, %v2029
      %v2031 = vrot.slane %v1927, 7
      %v2032 = vrot.slane %v2031, 2
      %v2033 = vrot.slane %v1928, 7
      %v2034 = vsel %vm1625, %v2032, %v2033
      %v2035 = vrot.slane %v2033, 2
      %v2036 = vrot.slane %v1929, 7
      %v2037 = vsel %vm1625, %v2035, %v2036
      %v2038 = vrot.slane %v2036, 2
      %v2039 = vrot.slane %v1930, 7
      %v2040 = vsel %vm1625, %v2038, %v2039
      %v2041 = vrot.slane %v2039, 2
      %v2042 = vrot.slane %v1931, 7
      %v2043 = vsel %vm1625, %v2041, %v2042
      %v2044 = vrot.slane %v1932, 7
      %v2045 = vrot.slane %v2044, 2
      %v2046 = vrot.slane %v1933, 7
      %v2047 = vsel %vm1625, %v2045, %v2046
      %v2048 = vrot.slane %v2046, 2
      %v2049 = vrot.slane %v1934, 7
      %v2050 = vsel %vm1625, %v2048, %v2049
      %v2051 = vrot.slane %v2049, 2
      %v2052 = vrot.slane %v1935, 7
      %v2053 = vsel %vm1625, %v2051, %v2052
      %v2054 = vrot.slane %v2052, 2
      %v2055 = vrot.slane %v1936, 7
      %v2056 = vsel %vm1625, %v2054, %v2055
      %v2057 = vrot.slane %v1937, 7
      %v2058 = vrot.slane %v2057, 2
      %v2059 = vrot.slane %v1938, 7
      %v2060 = vsel %vm1625, %v2058, %v2059
      %v2061 = vrot.slane %v2059, 2
      %v2062 = vrot.slane %v1939, 7
      %v2063 = vsel %vm1625, %v2061, %v2062
      %v2064 = vrot.slane %v2062, 2
      %v2065 = vrot.slane %v1940, 7
      %v2066 = vsel %vm1625, %v2064, %v2065
      %v2067 = vrot.slane %v2065, 2
      %v2068 = vrot.slane %v1941, 7
      %v2069 = vsel %vm1625, %v2067, %v2068
      %v2070 = vrot.slane %v1942, 7
      %v2071 = vrot.slane %v2070, 2
      %v2072 = vrot.slane %v1943, 7
      %v2073 = vsel %vm1625, %v2071, %v2072
      %v2074 = vrot.slane %v2072, 2
      %v2075 = vrot.slane %v1944, 7
      %v2076 = vsel %vm1625, %v2074, %v2075
      %v2077 = vrot.slane %v2075, 2
      %v2078 = vrot.slane %v1945, 7
      %v2079 = vsel %vm1625, %v2077, %v2078
      %v2080 = vrot.slane %v2078, 2
      %v2081 = vrot.slane %v1946, 7
      %v2082 = vsel %vm1625, %v2080, %v2081
      %v2083 = vrot.slane %v1947, 7
      %v2084 = vrot.slane %v2083, 2
      %v2085 = vrot.slane %v1948, 7
      %v2086 = vsel %vm1625, %v2084, %v2085
      %v2087 = vrot.slane %v2085, 2
      %v2088 = vrot.slane %v1949, 7
      %v2089 = vsel %vm1625, %v2087, %v2088
      %v2090 = vrot.slane %v2088, 2
      %v2091 = vrot.slane %v1950, 7
      %v2092 = vsel %vm1625, %v2090, %v2091
      %v2093 = vrot.slane %v2091, 2
      %v2094 = vrot.slane %v1951, 7
      %v2095 = vsel %vm1625, %v2093, %v2094
      %v2128 = vadd.f32 %v1858, %v1995
      %v2129 = vadd.f32 %v1859, %v1998
      %v2130 = vadd.f32 %v1860, %v2001
      %v2131 = vadd.f32 %v1861, %v2004
      %v2132 = vadd.f32 %v1862, %v2008
      %v2133 = vadd.f32 %v1863, %v2011
      %v2134 = vadd.f32 %v1864, %v2014
      %v2135 = vadd.f32 %v1865, %v2017
      %v2136 = vadd.f32 %v1866, %v2021
      %v2137 = vadd.f32 %v1867, %v2024
      %v2138 = vadd.f32 %v1868, %v2027
      %v2139 = vadd.f32 %v1869, %v2030
      %v2140 = vadd.f32 %v1870, %v2034
      %v2141 = vadd.f32 %v1871, %v2037
      %v2142 = vadd.f32 %v1872, %v2040
      %v2143 = vadd.f32 %v1873, %v2043
      %v2144 = vadd.f32 %v1874, %v2047
      %v2145 = vadd.f32 %v1875, %v2050
      %v2146 = vadd.f32 %v1876, %v2053
      %v2147 = vadd.f32 %v1877, %v2056
      %v2148 = vadd.f32 %v1878, %v2060
      %v2149 = vadd.f32 %v1879, %v2063
      %v2150 = vadd.f32 %v1880, %v2066
      %v2151 = vadd.f32 %v1881, %v2069
      %v2152 = vadd.f32 %v1882, %v2073
      %v2153 = vadd.f32 %v1883, %v2076
      %v2154 = vadd.f32 %v1884, %v2079
      %v2155 = vadd.f32 %v1885, %v2082
      %v2156 = vadd.f32 %v1886, %v2086
      %v2157 = vadd.f32 %v1887, %v2089
      %v2158 = vadd.f32 %v1888, %v2092
      %v2159 = vadd.f32 %v1889, %v2095
      %v2160 = vld [vmem:[%s4 + $0x3] sm:$0x1]
      %v2161 = vperm.slane %v2160, 0
      %v2163 = vrot.slane %v2161, 2
      %v2164 = vrot.slane %v2161, 4
      %v2165 = vrot.slane %v2161, 6
      %v2169 = vmul.f32 %v1372, %v2161
      %v2170 = vmul.f32 %v1373, %v2163
      %v2171 = vmul.f32 %v1374, %v2164
      %v2172 = vmul.f32 %v1256, %v2165
      %v2173 = vmul.f32 %v1379, %v2161
      %v2174 = vmul.f32 %v1380, %v2163
      %v2175 = vmul.f32 %v1258, %v2164
      %v2176 = vmul.f32 %v1381, %v2165
      %v2177 = vmul.f32 %v1386, %v2161
      %v2178 = vmul.f32 %v1260, %v2163
      %v2179 = vmul.f32 %v1387, %v2164
      %v2180 = vmul.f32 %v1388, %v2165
      %v2181 = vmul.f32 %v1262, %v2161
      %v2182 = vmul.f32 %v1393, %v2163
      %v2183 = vmul.f32 %v1394, %v2164
      %v2184 = vmul.f32 %v1395, %v2165
      %v2185 = vmul.f32 %v1399, %v2161
      %v2186 = vmul.f32 %v1400, %v2163
      %v2187 = vmul.f32 %v1401, %v2164
      %v2188 = vmul.f32 %v1265, %v2165
      %v2189 = vmul.f32 %v1406, %v2161
      %v2190 = vmul.f32 %v1407, %v2163
      %v2191 = vmul.f32 %v1267, %v2164
      %v2192 = vmul.f32 %v1408, %v2165
      %v2193 = vmul.f32 %v1413, %v2161
      %v2194 = vmul.f32 %v1269, %v2163
      %v2195 = vmul.f32 %v1414, %v2164
      %v2196 = vmul.f32 %v1415, %v2165
      %v2197 = vmul.f32 %v1271, %v2161
      %v2198 = vmul.f32 %v1420, %v2163
      %v2199 = vmul.f32 %v1421, %v2164
      %v2200 = vmul.f32 %v1422, %v2165
      %v2201 = vadd.f32 %v2128, %v2169
      %v2202 = vadd.f32 %v2129, %v2170
      %v2203 = vadd.f32 %v2130, %v2171
      %v2204 = vadd.f32 %v2131, %v2172
      %v2205 = vadd.f32 %v2132, %v2173
      %v2206 = vadd.f32 %v2133, %v2174
      %v2207 = vadd.f32 %v2134, %v2175
      %v2208 = vadd.f32 %v2135, %v2176
      %v2209 = vadd.f32 %v2136, %v2177
      %v2210 = vadd.f32 %v2137, %v2178
      %v2211 = vadd.f32 %v2138, %v2179
      %v2212 = vadd.f32 %v2139, %v2180
      %v2213 = vadd.f32 %v2140, %v2181
      %v2214 = vadd.f32 %v2141, %v2182
      %v2215 = vadd.f32 %v2142, %v2183
      %v2216 = vadd.f32 %v2143, %v2184
      %v2217 = vadd.f32 %v2144, %v2185
      %v2218 = vadd.f32 %v2145, %v2186
      %v2219 = vadd.f32 %v2146, %v2187
      %v2220 = vadd.f32 %v2147, %v2188
      %v2221 = vadd.f32 %v2148, %v2189
      %v2222 = vadd.f32 %v2149, %v2190
      %v2223 = vadd.f32 %v2150, %v2191
      %v2224 = vadd.f32 %v2151, %v2192
      %v2225 = vadd.f32 %v2152, %v2193
      %v2226 = vadd.f32 %v2153, %v2194
      %v2227 = vadd.f32 %v2154, %v2195
      %v2228 = vadd.f32 %v2155, %v2196
      %v2229 = vadd.f32 %v2156, %v2197
      %v2230 = vadd.f32 %v2157, %v2198
      %v2231 = vadd.f32 %v2158, %v2199
      %v2232 = vadd.f32 %v2159, %v2200
      %v2233 = vld [vmem:[%s4 + $0x4] sm:$0x1]
      %v2234 = vperm.slane %v2233, 0
      %v2236 = vrot.slane %v2234, 2
      %v2237 = vrot.slane %v2234, 4
      %v2238 = vrot.slane %v2234, 6
      %v2239 = vrot.slane %v2234, 7
      %v2240 = vrot.slane %v2239, 2
      %v2241 = vrot.slane %v2236, 7
      %v2242 = vsel %vm1625, %v2240, %v2241
      %v2243 = vrot.slane %v2241, 2
      %v2244 = vrot.slane %v2237, 7
      %v2245 = vsel %vm1625, %v2243, %v2244
      %v2246 = vrot.slane %v2244, 2
      %v2247 = vrot.slane %v2238, 7
      %v2248 = vsel %vm1625, %v2246, %v2247
      %v2249 = vrot.slane %v2247, 2
      %v2255 = vmul.f32 %v1375, %v2239
      %v2256 = vmul.f32 %v1376, %v2242
      %v2257 = vmul.f32 %v1377, %v2245
      %v2258 = vmul.f32 %v1257, %v2248
      %v2259 = vmul.f32 %v1378, %v2249
      %v2260 = vmul.f32 %v1382, %v2239
      %v2261 = vmul.f32 %v1383, %v2242
      %v2262 = vmul.f32 %v1259, %v2245
      %v2263 = vmul.f32 %v1384, %v2248
      %v2264 = vmul.f32 %v1385, %v2249
      %v2265 = vmul.f32 %v1389, %v2239
      %v2266 = vmul.f32 %v1261, %v2242
      %v2267 = vmul.f32 %v1390, %v2245
      %v2268 = vmul.f32 %v1391, %v2248
      %v2269 = vmul.f32 %v1392, %v2249
      %v2270 = vmul.f32 %v1263, %v2239
      %v2271 = vmul.f32 %v1396, %v2242
      %v2272 = vmul.f32 %v1397, %v2245
      %v2273 = vmul.f32 %v1398, %v2248
      %v2274 = vmul.f32 %v1264, %v2249
      %v2275 = vmul.f32 %v1402, %v2239
      %v2276 = vmul.f32 %v1403, %v2242
      %v2277 = vmul.f32 %v1404, %v2245
      %v2278 = vmul.f32 %v1266, %v2248
      %v2279 = vmul.f32 %v1405, %v2249
      %v2280 = vmul.f32 %v1409, %v2239
      %v2281 = vmul.f32 %v1410, %v2242
      %v2282 = vmul.f32 %v1268, %v2245
      %v2283 = vmul.f32 %v1411, %v2248
      %v2284 = vmul.f32 %v1412, %v2249
      %v2285 = vmul.f32 %v1416, %v2239
      %v2286 = vmul.f32 %v1270, %v2242
      %v2287 = vmul.f32 %v1417, %v2245
      %v2288 = vmul.f32 %v1418, %v2248
      %v2289 = vmul.f32 %v1419, %v2249
      %v2290 = vmul.f32 %v1272, %v2239
      %v2291 = vmul.f32 %v1423, %v2242
      %v2292 = vmul.f32 %v1424, %v2245
      %v2293 = vmul.f32 %v1425, %v2248
      %v2294 = vmul.f32 %v1273, %v2249
      %v2335 = vrot.slane %v2255, 7
      %v2336 = vrot.slane %v2335, 2
      %v2337 = vrot.slane %v2256, 7
      %v2338 = vsel %vm1625, %v2336, %v2337
      %v2339 = vrot.slane %v2337, 2
      %v2340 = vrot.slane %v2257, 7
      %v2341 = vsel %vm1625, %v2339, %v2340
      %v2342 = vrot.slane %v2340, 2
      %v2343 = vrot.slane %v2258, 7
      %v2344 = vsel %vm1625, %v2342, %v2343
      %v2345 = vrot.slane %v2343, 2
      %v2346 = vrot.slane %v2259, 7
      %v2347 = vsel %vm1625, %v2345, %v2346
      %v2348 = vrot.slane %v2260, 7
      %v2349 = vrot.slane %v2348, 2
      %v2350 = vrot.slane %v2261, 7
      %v2351 = vsel %vm1625, %v2349, %v2350
      %v2352 = vrot.slane %v2350, 2
      %v2353 = vrot.slane %v2262, 7
      %v2354 = vsel %vm1625, %v2352, %v2353
      %v2355 = vrot.slane %v2353, 2
      %v2356 = vrot.slane %v2263, 7
      %v2357 = vsel %vm1625, %v2355, %v2356
      %v2358 = vrot.slane %v2356, 2
      %v2359 = vrot.slane %v2264, 7
      %v2360 = vsel %vm1625, %v2358, %v2359
      %v2361 = vrot.slane %v2265, 7
      %v2362 = vrot.slane %v2361, 2
      %v2363 = vrot.slane %v2266, 7
      %v2364 = vsel %vm1625, %v2362, %v2363
      %v2365 = vrot.slane %v2363, 2
      %v2366 = vrot.slane %v2267, 7
      %v2367 = vsel %vm1625, %v2365, %v2366
      %v2368 = vrot.slane %v2366, 2
      %v2369 = vrot.slane %v2268, 7
      %v2370 = vsel %vm1625, %v2368, %v2369
      %v2371 = vrot.slane %v2369, 2
      %v2372 = vrot.slane %v2269, 7
      %v2373 = vsel %vm1625, %v2371, %v2372
      %v2374 = vrot.slane %v2270, 7
      %v2375 = vrot.slane %v2374, 2
      %v2376 = vrot.slane %v2271, 7
      %v2377 = vsel %vm1625, %v2375, %v2376
      %v2378 = vrot.slane %v2376, 2
      %v2379 = vrot.slane %v2272, 7
      %v2380 = vsel %vm1625, %v2378, %v2379
      %v2381 = vrot.slane %v2379, 2
      %v2382 = vrot.slane %v2273, 7
      %v2383 = vsel %vm1625, %v2381, %v2382
      %v2384 = vrot.slane %v2382, 2
      %v2385 = vrot.slane %v2274, 7
      %v2386 = vsel %vm1625, %v2384, %v2385
      %v2387 = vrot.slane %v2275, 7
      %v2388 = vrot.slane %v2387, 2
      %v2389 = vrot.slane %v2276, 7
      %v2390 = vsel %vm1625, %v2388, %v2389
      %v2391 = vrot.slane %v2389, 2
      %v2392 = vrot.slane %v2277, 7
      %v2393 = vsel %vm1625, %v2391, %v2392
      %v2394 = vrot.slane %v2392, 2
      %v2395 = vrot.slane %v2278, 7
      %v2396 = vsel %vm1625, %v2394, %v2395
      %v2397 = vrot.slane %v2395, 2
      %v2398 = vrot.slane %v2279, 7
      %v2399 = vsel %vm1625, %v2397, %v2398
      %v2400 = vrot.slane %v2280, 7
      %v2401 = vrot.slane %v2400, 2
      %v2402 = vrot.slane %v2281, 7
      %v2403 = vsel %vm1625, %v2401, %v2402
      %v2404 = vrot.slane %v2402, 2
      %v2405 = vrot.slane %v2282, 7
      %v2406 = vsel %vm1625, %v2404, %v2405
      %v2407 = vrot.slane %v2405, 2
      %v2408 = vrot.slane %v2283, 7
      %v2409 = vsel %vm1625, %v2407, %v2408
      %v2410 = vrot.slane %v2408, 2
      %v2411 = vrot.slane %v2284, 7
      %v2412 = vsel %vm1625, %v2410, %v2411
      %v2413 = vrot.slane %v2285, 7
      %v2414 = vrot.slane %v2413, 2
      %v2415 = vrot.slane %v2286, 7
      %v2416 = vsel %vm1625, %v2414, %v2415
      %v2417 = vrot.slane %v2415, 2
      %v2418 = vrot.slane %v2287, 7
      %v2419 = vsel %vm1625, %v2417, %v2418
      %v2420 = vrot.slane %v2418, 2
      %v2421 = vrot.slane %v2288, 7
      %v2422 = vsel %vm1625, %v2420, %v2421
      %v2423 = vrot.slane %v2421, 2
      %v2424 = vrot.slane %v2289, 7
      %v2425 = vsel %vm1625, %v2423, %v2424
      %v2426 = vrot.slane %v2290, 7
      %v2427 = vrot.slane %v2426, 2
      %v2428 = vrot.slane %v2291, 7
      %v2429 = vsel %vm1625, %v2427, %v2428
      %v2430 = vrot.slane %v2428, 2
      %v2431 = vrot.slane %v2292, 7
      %v2432 = vsel %vm1625, %v2430, %v2431
      %v2433 = vrot.slane %v2431, 2
      %v2434 = vrot.slane %v2293, 7
      %v2435 = vsel %vm1625, %v2433, %v2434
      %v2436 = vrot.slane %v2434, 2
      %v2437 = vrot.slane %v2294, 7
      %v2438 = vsel %vm1625, %v2436, %v2437
      %v2471 = vadd.f32 %v2201, %v2338
      %v2472 = vadd.f32 %v2202, %v2341
      %v2473 = vadd.f32 %v2203, %v2344
      %v2474 = vadd.f32 %v2204, %v2347
      %v2475 = vadd.f32 %v2205, %v2351
      %v2476 = vadd.f32 %v2206, %v2354
      %v2477 = vadd.f32 %v2207, %v2357
      %v2478 = vadd.f32 %v2208, %v2360
      %v2479 = vadd.f32 %v2209, %v2364
      %v2480 = vadd.f32 %v2210, %v2367
      %v2481 = vadd.f32 %v2211, %v2370
      %v2482 = vadd.f32 %v2212, %v2373
      %v2483 = vadd.f32 %v2213, %v2377
      %v2484 = vadd.f32 %v2214, %v2380
      %v2485 = vadd.f32 %v2215, %v2383
      %v2486 = vadd.f32 %v2216, %v2386
      %v2487 = vadd.f32 %v2217, %v2390
      %v2488 = vadd.f32 %v2218, %v2393
      %v2489 = vadd.f32 %v2219, %v2396
      %v2490 = vadd.f32 %v2220, %v2399
      %v2491 = vadd.f32 %v2221, %v2403
      %v2492 = vadd.f32 %v2222, %v2406
      %v2493 = vadd.f32 %v2223, %v2409
      %v2494 = vadd.f32 %v2224, %v2412
      %v2495 = vadd.f32 %v2225, %v2416
      %v2496 = vadd.f32 %v2226, %v2419
      %v2497 = vadd.f32 %v2227, %v2422
      %v2498 = vadd.f32 %v2228, %v2425
      %v2499 = vadd.f32 %v2229, %v2429
      %v2500 = vadd.f32 %v2230, %v2432
      %v2501 = vadd.f32 %v2231, %v2435
      %v2502 = vadd.f32 %v2232, %v2438
      %v2503 = vld [vmem:[%s4 + $0x5] sm:$0x1]
      %v2504 = vperm.slane %v2503, 0
      %v2506 = vrot.slane %v2504, 2
      %v2507 = vrot.slane %v2504, 4
      %v2508 = vrot.slane %v2504, 6
      %v2509 = vrot.slane %v2504, 7
      %v2510 = vrot.slane %v2509, 2
      %v2511 = vrot.slane %v2506, 7
      %v2512 = vsel %vm1625, %v2510, %v2511
      %v2513 = vrot.slane %v2511, 2
      %v2514 = vrot.slane %v2507, 7
      %v2515 = vsel %vm1625, %v2513, %v2514
      %v2516 = vrot.slane %v2514, 2
      %v2517 = vrot.slane %v2508, 7
      %v2518 = vsel %vm1625, %v2516, %v2517
      %v2519 = vrot.slane %v2517, 2
      %v2525 = vmul.f32 %v1372, %v2509
      %v2526 = vmul.f32 %v1373, %v2512
      %v2527 = vmul.f32 %v1374, %v2515
      %v2528 = vmul.f32 %v1256, %v2518
      %v2529 = vmul.f32 %v1375, %v2519
      %v2530 = vmul.f32 %v1379, %v2509
      %v2531 = vmul.f32 %v1380, %v2512
      %v2532 = vmul.f32 %v1258, %v2515
      %v2533 = vmul.f32 %v1381, %v2518
      %v2534 = vmul.f32 %v1382, %v2519
      %v2535 = vmul.f32 %v1386, %v2509
      %v2536 = vmul.f32 %v1260, %v2512
      %v2537 = vmul.f32 %v1387, %v2515
      %v2538 = vmul.f32 %v1388, %v2518
      %v2539 = vmul.f32 %v1389, %v2519
      %v2540 = vmul.f32 %v1262, %v2509
      %v2541 = vmul.f32 %v1393, %v2512
      %v2542 = vmul.f32 %v1394, %v2515
      %v2543 = vmul.f32 %v1395, %v2518
      %v2544 = vmul.f32 %v1263, %v2519
      %v2545 = vmul.f32 %v1399, %v2509
      %v2546 = vmul.f32 %v1400, %v2512
      %v2547 = vmul.f32 %v1401, %v2515
      %v2548 = vmul.f32 %v1265, %v2518
      %v2549 = vmul.f32 %v1402, %v2519
      %v2550 = vmul.f32 %v1406, %v2509
      %v2551 = vmul.f32 %v1407, %v2512
      %v2552 = vmul.f32 %v1267, %v2515
      %v2553 = vmul.f32 %v1408, %v2518
      %v2554 = vmul.f32 %v1409, %v2519
      %v2555 = vmul.f32 %v1413, %v2509
      %v2556 = vmul.f32 %v1269, %v2512
      %v2557 = vmul.f32 %v1414, %v2515
      %v2558 = vmul.f32 %v1415, %v2518
      %v2559 = vmul.f32 %v1416, %v2519
      %v2560 = vmul.f32 %v1271, %v2509
      %v2561 = vmul.f32 %v1420, %v2512
      %v2562 = vmul.f32 %v1421, %v2515
      %v2563 = vmul.f32 %v1422, %v2518
      %v2564 = vmul.f32 %v1272, %v2519
      %v2605 = vrot.slane %v2525, 7
      %v2606 = vrot.slane %v2605, 2
      %v2607 = vrot.slane %v2526, 7
      %v2608 = vsel %vm1625, %v2606, %v2607
      %v2609 = vrot.slane %v2607, 2
      %v2610 = vrot.slane %v2527, 7
      %v2611 = vsel %vm1625, %v2609, %v2610
      %v2612 = vrot.slane %v2610, 2
      %v2613 = vrot.slane %v2528, 7
      %v2614 = vsel %vm1625, %v2612, %v2613
      %v2615 = vrot.slane %v2613, 2
      %v2616 = vrot.slane %v2529, 7
      %v2617 = vsel %vm1625, %v2615, %v2616
      %v2618 = vrot.slane %v2530, 7
      %v2619 = vrot.slane %v2618, 2
      %v2620 = vrot.slane %v2531, 7
      %v2621 = vsel %vm1625, %v2619, %v2620
      %v2622 = vrot.slane %v2620, 2
      %v2623 = vrot.slane %v2532, 7
      %v2624 = vsel %vm1625, %v2622, %v2623
      %v2625 = vrot.slane %v2623, 2
      %v2626 = vrot.slane %v2533, 7
      %v2627 = vsel %vm1625, %v2625, %v2626
      %v2628 = vrot.slane %v2626, 2
      %v2629 = vrot.slane %v2534, 7
      %v2630 = vsel %vm1625, %v2628, %v2629
      %v2631 = vrot.slane %v2535, 7
      %v2632 = vrot.slane %v2631, 2
      %v2633 = vrot.slane %v2536, 7
      %v2634 = vsel %vm1625, %v2632, %v2633
      %v2635 = vrot.slane %v2633, 2
      %v2636 = vrot.slane %v2537, 7
      %v2637 = vsel %vm1625, %v2635, %v2636
      %v2638 = vrot.slane %v2636, 2
      %v2639 = vrot.slane %v2538, 7
      %v2640 = vsel %vm1625, %v2638, %v2639
      %v2641 = vrot.slane %v2639, 2
      %v2642 = vrot.slane %v2539, 7
      %v2643 = vsel %vm1625, %v2641, %v2642
      %v2644 = vrot.slane %v2540, 7
      %v2645 = vrot.slane %v2644, 2
      %v2646 = vrot.slane %v2541, 7
      %v2647 = vsel %vm1625, %v2645, %v2646
      %v2648 = vrot.slane %v2646, 2
      %v2649 = vrot.slane %v2542, 7
      %v2650 = vsel %vm1625, %v2648, %v2649
      %v2651 = vrot.slane %v2649, 2
      %v2652 = vrot.slane %v2543, 7
      %v2653 = vsel %vm1625, %v2651, %v2652
      %v2654 = vrot.slane %v2652, 2
      %v2655 = vrot.slane %v2544, 7
      %v2656 = vsel %vm1625, %v2654, %v2655
      %v2657 = vrot.slane %v2545, 7
      %v2658 = vrot.slane %v2657, 2
      %v2659 = vrot.slane %v2546, 7
      %v2660 = vsel %vm1625, %v2658, %v2659
      %v2661 = vrot.slane %v2659, 2
      %v2662 = vrot.slane %v2547, 7
      %v2663 = vsel %vm1625, %v2661, %v2662
      %v2664 = vrot.slane %v2662, 2
      %v2665 = vrot.slane %v2548, 7
      %v2666 = vsel %vm1625, %v2664, %v2665
      %v2667 = vrot.slane %v2665, 2
      %v2668 = vrot.slane %v2549, 7
      %v2669 = vsel %vm1625, %v2667, %v2668
      %v2670 = vrot.slane %v2550, 7
      %v2671 = vrot.slane %v2670, 2
      %v2672 = vrot.slane %v2551, 7
      %v2673 = vsel %vm1625, %v2671, %v2672
      %v2674 = vrot.slane %v2672, 2
      %v2675 = vrot.slane %v2552, 7
      %v2676 = vsel %vm1625, %v2674, %v2675
      %v2677 = vrot.slane %v2675, 2
      %v2678 = vrot.slane %v2553, 7
      %v2679 = vsel %vm1625, %v2677, %v2678
      %v2680 = vrot.slane %v2678, 2
      %v2681 = vrot.slane %v2554, 7
      %v2682 = vsel %vm1625, %v2680, %v2681
      %v2683 = vrot.slane %v2555, 7
      %v2684 = vrot.slane %v2683, 2
      %v2685 = vrot.slane %v2556, 7
      %v2686 = vsel %vm1625, %v2684, %v2685
      %v2687 = vrot.slane %v2685, 2
      %v2688 = vrot.slane %v2557, 7
      %v2689 = vsel %vm1625, %v2687, %v2688
      %v2690 = vrot.slane %v2688, 2
      %v2691 = vrot.slane %v2558, 7
      %v2692 = vsel %vm1625, %v2690, %v2691
      %v2693 = vrot.slane %v2691, 2
      %v2694 = vrot.slane %v2559, 7
      %v2695 = vsel %vm1625, %v2693, %v2694
      %v2696 = vrot.slane %v2560, 7
      %v2697 = vrot.slane %v2696, 2
      %v2698 = vrot.slane %v2561, 7
      %v2699 = vsel %vm1625, %v2697, %v2698
      %v2700 = vrot.slane %v2698, 2
      %v2701 = vrot.slane %v2562, 7
      %v2702 = vsel %vm1625, %v2700, %v2701
      %v2703 = vrot.slane %v2701, 2
      %v2704 = vrot.slane %v2563, 7
      %v2705 = vsel %vm1625, %v2703, %v2704
      %v2706 = vrot.slane %v2704, 2
      %v2707 = vrot.slane %v2564, 7
      %v2708 = vsel %vm1625, %v2706, %v2707
      %v2741 = vadd.f32 %v2471, %v2608
      %v2742 = vadd.f32 %v2472, %v2611
      %v2743 = vadd.f32 %v2473, %v2614
      %v2744 = vadd.f32 %v2474, %v2617
      %v2745 = vadd.f32 %v2475, %v2621
      %v2746 = vadd.f32 %v2476, %v2624
      %v2747 = vadd.f32 %v2477, %v2627
      %v2748 = vadd.f32 %v2478, %v2630
      %v2749 = vadd.f32 %v2479, %v2634
      %v2750 = vadd.f32 %v2480, %v2637
      %v2751 = vadd.f32 %v2481, %v2640
      %v2752 = vadd.f32 %v2482, %v2643
      %v2753 = vadd.f32 %v2483, %v2647
      %v2754 = vadd.f32 %v2484, %v2650
      %v2755 = vadd.f32 %v2485, %v2653
      %v2756 = vadd.f32 %v2486, %v2656
      %v2757 = vadd.f32 %v2487, %v2660
      %v2758 = vadd.f32 %v2488, %v2663
      %v2759 = vadd.f32 %v2489, %v2666
      %v2760 = vadd.f32 %v2490, %v2669
      %v2761 = vadd.f32 %v2491, %v2673
      %v2762 = vadd.f32 %v2492, %v2676
      %v2763 = vadd.f32 %v2493, %v2679
      %v2764 = vadd.f32 %v2494, %v2682
      %v2765 = vadd.f32 %v2495, %v2686
      %v2766 = vadd.f32 %v2496, %v2689
      %v2767 = vadd.f32 %v2497, %v2692
      %v2768 = vadd.f32 %v2498, %v2695
      %v2769 = vadd.f32 %v2499, %v2699
      %v2770 = vadd.f32 %v2500, %v2702
      %v2771 = vadd.f32 %v2501, %v2705
      %v2772 = vadd.f32 %v2502, %v2708
      %v2773 = vld [vmem:[%s4 + $0x6] sm:$0x1]
      %v2774 = vperm.slane %v2773, 0
      %v2776 = vrot.slane %v2774, 2
      %v2777 = vrot.slane %v2774, 4
      %v2778 = vrot.slane %v2774, 6
      %v2782 = vmul.f32 %v1318, %v2774
      %v2783 = vmul.f32 %v1319, %v2776
      %v2784 = vmul.f32 %v1320, %v2777
      %v2785 = vmul.f32 %v1238, %v2778
      %v2786 = vmul.f32 %v1325, %v2774
      %v2787 = vmul.f32 %v1326, %v2776
      %v2788 = vmul.f32 %v1240, %v2777
      %v2789 = vmul.f32 %v1327, %v2778
      %v2790 = vmul.f32 %v1332, %v2774
      %v2791 = vmul.f32 %v1242, %v2776
      %v2792 = vmul.f32 %v1333, %v2777
      %v2793 = vmul.f32 %v1334, %v2778
      %v2794 = vmul.f32 %v1244, %v2774
      %v2795 = vmul.f32 %v1339, %v2776
      %v2796 = vmul.f32 %v1340, %v2777
      %v2797 = vmul.f32 %v1341, %v2778
      %v2798 = vmul.f32 %v1345, %v2774
      %v2799 = vmul.f32 %v1346, %v2776
      %v2800 = vmul.f32 %v1347, %v2777
      %v2801 = vmul.f32 %v1247, %v2778
      %v2802 = vmul.f32 %v1352, %v2774
      %v2803 = vmul.f32 %v1353, %v2776
      %v2804 = vmul.f32 %v1249, %v2777
      %v2805 = vmul.f32 %v1354, %v2778
      %v2806 = vmul.f32 %v1359, %v2774
      %v2807 = vmul.f32 %v1251, %v2776
      %v2808 = vmul.f32 %v1360, %v2777
      %v2809 = vmul.f32 %v1361, %v2778
      %v2810 = vmul.f32 %v1253, %v2774
      %v2811 = vmul.f32 %v1366, %v2776
      %v2812 = vmul.f32 %v1367, %v2777
      %v2813 = vmul.f32 %v1368, %v2778
      %v2814 = vadd.f32 %v2741, %v2782
      %v2815 = vadd.f32 %v2742, %v2783
      %v2816 = vadd.f32 %v2743, %v2784
      %v2817 = vadd.f32 %v2744, %v2785
      %v2818 = vadd.f32 %v2745, %v2786
      %v2819 = vadd.f32 %v2746, %v2787
      %v2820 = vadd.f32 %v2747, %v2788
      %v2821 = vadd.f32 %v2748, %v2789
      %v2822 = vadd.f32 %v2749, %v2790
      %v2823 = vadd.f32 %v2750, %v2791
      %v2824 = vadd.f32 %v2751, %v2792
      %v2825 = vadd.f32 %v2752, %v2793
      %v2826 = vadd.f32 %v2753, %v2794
      %v2827 = vadd.f32 %v2754, %v2795
      %v2828 = vadd.f32 %v2755, %v2796
      %v2829 = vadd.f32 %v2756, %v2797
      %v2830 = vadd.f32 %v2757, %v2798
      %v2831 = vadd.f32 %v2758, %v2799
      %v2832 = vadd.f32 %v2759, %v2800
      %v2833 = vadd.f32 %v2760, %v2801
      %v2834 = vadd.f32 %v2761, %v2802
      %v2835 = vadd.f32 %v2762, %v2803
      %v2836 = vadd.f32 %v2763, %v2804
      %v2837 = vadd.f32 %v2764, %v2805
      %v2838 = vadd.f32 %v2765, %v2806
      %v2839 = vadd.f32 %v2766, %v2807
      %v2840 = vadd.f32 %v2767, %v2808
      %v2841 = vadd.f32 %v2768, %v2809
      %v2842 = vadd.f32 %v2769, %v2810
      %v2843 = vadd.f32 %v2770, %v2811
      %v2844 = vadd.f32 %v2771, %v2812
      %v2845 = vadd.f32 %v2772, %v2813
      %v2846 = vld [vmem:[%s4 + $0x7] sm:$0x1]
      %v2847 = vperm.slane %v2846, 0
      %v2849 = vrot.slane %v2847, 2
      %v2850 = vrot.slane %v2847, 4
      %v2851 = vrot.slane %v2847, 6
      %v2852 = vrot.slane %v2847, 7
      %v2853 = vrot.slane %v2852, 2
      %v2854 = vrot.slane %v2849, 7
      %v2855 = vsel %vm1625, %v2853, %v2854
      %v2856 = vrot.slane %v2854, 2
      %v2857 = vrot.slane %v2850, 7
      %v2858 = vsel %vm1625, %v2856, %v2857
      %v2859 = vrot.slane %v2857, 2
      %v2860 = vrot.slane %v2851, 7
      %v2861 = vsel %vm1625, %v2859, %v2860
      %v2862 = vrot.slane %v2860, 2
      %v2868 = vmul.f32 %v1321, %v2852
      %v2869 = vmul.f32 %v1322, %v2855
      %v2870 = vmul.f32 %v1323, %v2858
      %v2871 = vmul.f32 %v1239, %v2861
      %v2872 = vmul.f32 %v1324, %v2862
      %v2873 = vmul.f32 %v1328, %v2852
      %v2874 = vmul.f32 %v1329, %v2855
      %v2875 = vmul.f32 %v1241, %v2858
      %v2876 = vmul.f32 %v1330, %v2861
      %v2877 = vmul.f32 %v1331, %v2862
      %v2878 = vmul.f32 %v1335, %v2852
      %v2879 = vmul.f32 %v1243, %v2855
      %v2880 = vmul.f32 %v1336, %v2858
      %v2881 = vmul.f32 %v1337, %v2861
      %v2882 = vmul.f32 %v1338, %v2862
      %v2883 = vmul.f32 %v1245, %v2852
      %v2884 = vmul.f32 %v1342, %v2855
      %v2885 = vmul.f32 %v1343, %v2858
      %v2886 = vmul.f32 %v1344, %v2861
      %v2887 = vmul.f32 %v1246, %v2862
      %v2888 = vmul.f32 %v1348, %v2852
      %v2889 = vmul.f32 %v1349, %v2855
      %v2890 = vmul.f32 %v1350, %v2858
      %v2891 = vmul.f32 %v1248, %v2861
      %v2892 = vmul.f32 %v1351, %v2862
      %v2893 = vmul.f32 %v1355, %v2852
      %v2894 = vmul.f32 %v1356, %v2855
      %v2895 = vmul.f32 %v1250, %v2858
      %v2896 = vmul.f32 %v1357, %v2861
      %v2897 = vmul.f32 %v1358, %v2862
      %v2898 = vmul.f32 %v1362, %v2852
      %v2899 = vmul.f32 %v1252, %v2855
      %v2900 = vmul.f32 %v1363, %v2858
      %v2901 = vmul.f32 %v1364, %v2861
      %v2902 = vmul.f32 %v1365, %v2862
      %v2903 = vmul.f32 %v1254, %v2852
      %v2904 = vmul.f32 %v1369, %v2855
      %v2905 = vmul.f32 %v1370, %v2858
      %v2906 = vmul.f32 %v1371, %v2861
      %v2907 = vmul.f32 %v1255, %v2862
      %v2948 = vrot.slane %v2868, 7
      %v2949 = vrot.slane %v2948, 2
      %v2950 = vrot.slane %v2869, 7
      %v2951 = vsel %vm1625, %v2949, %v2950
      %v2952 = vrot.slane %v2950, 2
      %v2953 = vrot.slane %v2870, 7
      %v2954 = vsel %vm1625, %v2952, %v2953
      %v2955 = vrot.slane %v2953, 2
      %v2956 = vrot.slane %v2871, 7
      %v2957 = vsel %vm1625, %v2955, %v2956
      %v2958 = vrot.slane %v2956, 2
      %v2959 = vrot.slane %v2872, 7
      %v2960 = vsel %vm1625, %v2958, %v2959
      %v2961 = vrot.slane %v2873, 7
      %v2962 = vrot.slane %v2961, 2
      %v2963 = vrot.slane %v2874, 7
      %v2964 = vsel %vm1625, %v2962, %v2963
      %v2965 = vrot.slane %v2963, 2
      %v2966 = vrot.slane %v2875, 7
      %v2967 = vsel %vm1625, %v2965, %v2966
      %v2968 = vrot.slane %v2966, 2
      %v2969 = vrot.slane %v2876, 7
      %v2970 = vsel %vm1625, %v2968, %v2969
      %v2971 = vrot.slane %v2969, 2
      %v2972 = vrot.slane %v2877, 7
      %v2973 = vsel %vm1625, %v2971, %v2972
      %v2974 = vrot.slane %v2878, 7
      %v2975 = vrot.slane %v2974, 2
      %v2976 = vrot.slane %v2879, 7
      %v2977 = vsel %vm1625, %v2975, %v2976
      %v2978 = vrot.slane %v2976, 2
      %v2979 = vrot.slane %v2880, 7
      %v2980 = vsel %vm1625, %v2978, %v2979
      %v2981 = vrot.slane %v2979, 2
      %v2982 = vrot.slane %v2881, 7
      %v2983 = vsel %vm1625, %v2981, %v2982
      %v2984 = vrot.slane %v2982, 2
      %v2985 = vrot.slane %v2882, 7
      %v2986 = vsel %vm1625, %v2984, %v2985
      %v2987 = vrot.slane %v2883, 7
      %v2988 = vrot.slane %v2987, 2
      %v2989 = vrot.slane %v2884, 7
      %v2990 = vsel %vm1625, %v2988, %v2989
      %v2991 = vrot.slane %v2989, 2
      %v2992 = vrot.slane %v2885, 7
      %v2993 = vsel %vm1625, %v2991, %v2992
      %v2994 = vrot.slane %v2992, 2
      %v2995 = vrot.slane %v2886, 7
      %v2996 = vsel %vm1625, %v2994, %v2995
      %v2997 = vrot.slane %v2995, 2
      %v2998 = vrot.slane %v2887, 7
      %v2999 = vsel %vm1625, %v2997, %v2998
      %v3000 = vrot.slane %v2888, 7
      %v3001 = vrot.slane %v3000, 2
      %v3002 = vrot.slane %v2889, 7
      %v3003 = vsel %vm1625, %v3001, %v3002
      %v3004 = vrot.slane %v3002, 2
      %v3005 = vrot.slane %v2890, 7
      %v3006 = vsel %vm1625, %v3004, %v3005
      %v3007 = vrot.slane %v3005, 2
      %v3008 = vrot.slane %v2891, 7
      %v3009 = vsel %vm1625, %v3007, %v3008
      %v3010 = vrot.slane %v3008, 2
      %v3011 = vrot.slane %v2892, 7
      %v3012 = vsel %vm1625, %v3010, %v3011
      %v3013 = vrot.slane %v2893, 7
      %v3014 = vrot.slane %v3013, 2
      %v3015 = vrot.slane %v2894, 7
      %v3016 = vsel %vm1625, %v3014, %v3015
      %v3017 = vrot.slane %v3015, 2
      %v3018 = vrot.slane %v2895, 7
      %v3019 = vsel %vm1625, %v3017, %v3018
      %v3020 = vrot.slane %v3018, 2
      %v3021 = vrot.slane %v2896, 7
      %v3022 = vsel %vm1625, %v3020, %v3021
      %v3023 = vrot.slane %v3021, 2
      %v3024 = vrot.slane %v2897, 7
      %v3025 = vsel %vm1625, %v3023, %v3024
      %v3026 = vrot.slane %v2898, 7
      %v3027 = vrot.slane %v3026, 2
      %v3028 = vrot.slane %v2899, 7
      %v3029 = vsel %vm1625, %v3027, %v3028
      %v3030 = vrot.slane %v3028, 2
      %v3031 = vrot.slane %v2900, 7
      %v3032 = vsel %vm1625, %v3030, %v3031
      %v3033 = vrot.slane %v3031, 2
      %v3034 = vrot.slane %v2901, 7
      %v3035 = vsel %vm1625, %v3033, %v3034
      %v3036 = vrot.slane %v3034, 2
      %v3037 = vrot.slane %v2902, 7
      %v3038 = vsel %vm1625, %v3036, %v3037
      %v3039 = vrot.slane %v2903, 7
      %v3040 = vrot.slane %v3039, 2
      %v3041 = vrot.slane %v2904, 7
      %v3042 = vsel %vm1625, %v3040, %v3041
      %v3043 = vrot.slane %v3041, 2
      %v3044 = vrot.slane %v2905, 7
      %v3045 = vsel %vm1625, %v3043, %v3044
      %v3046 = vrot.slane %v3044, 2
      %v3047 = vrot.slane %v2906, 7
      %v3048 = vsel %vm1625, %v3046, %v3047
      %v3049 = vrot.slane %v3047, 2
      %v3050 = vrot.slane %v2907, 7
      %v3051 = vsel %vm1625, %v3049, %v3050
      %v3084 = vadd.f32 %v2814, %v2951
      %v3085 = vadd.f32 %v2815, %v2954
      %v3086 = vadd.f32 %v2816, %v2957
      %v3087 = vadd.f32 %v2817, %v2960
      %v3088 = vadd.f32 %v2818, %v2964
      %v3089 = vadd.f32 %v2819, %v2967
      %v3090 = vadd.f32 %v2820, %v2970
      %v3091 = vadd.f32 %v2821, %v2973
      %v3092 = vadd.f32 %v2822, %v2977
      %v3093 = vadd.f32 %v2823, %v2980
      %v3094 = vadd.f32 %v2824, %v2983
      %v3095 = vadd.f32 %v2825, %v2986
      %v3096 = vadd.f32 %v2826, %v2990
      %v3097 = vadd.f32 %v2827, %v2993
      %v3098 = vadd.f32 %v2828, %v2996
      %v3099 = vadd.f32 %v2829, %v2999
      %v3100 = vadd.f32 %v2830, %v3003
      %v3101 = vadd.f32 %v2831, %v3006
      %v3102 = vadd.f32 %v2832, %v3009
      %v3103 = vadd.f32 %v2833, %v3012
      %v3104 = vadd.f32 %v2834, %v3016
      %v3105 = vadd.f32 %v2835, %v3019
      %v3106 = vadd.f32 %v2836, %v3022
      %v3107 = vadd.f32 %v2837, %v3025
      %v3108 = vadd.f32 %v2838, %v3029
      %v3109 = vadd.f32 %v2839, %v3032
      %v3110 = vadd.f32 %v2840, %v3035
      %v3111 = vadd.f32 %v2841, %v3038
      %v3112 = vadd.f32 %v2842, %v3042
      %v3113 = vadd.f32 %v2843, %v3045
      %v3114 = vadd.f32 %v2844, %v3048
      %v3115 = vadd.f32 %v2845, %v3051
      %v3116 = vld [vmem:[%s4 + $0x8] sm:$0x1]
      %v3117 = vperm.slane %v3116, 0
      %v3119 = vrot.slane %v3117, 2
      %v3120 = vrot.slane %v3117, 4
      %v3121 = vrot.slane %v3117, 6
      %v3122 = vrot.slane %v3117, 7
      %v3123 = vrot.slane %v3122, 2
      %v3124 = vrot.slane %v3119, 7
      %v3125 = vsel %vm1625, %v3123, %v3124
      %v3126 = vrot.slane %v3124, 2
      %v3127 = vrot.slane %v3120, 7
      %v3128 = vsel %vm1625, %v3126, %v3127
      %v3129 = vrot.slane %v3127, 2
      %v3130 = vrot.slane %v3121, 7
      %v3131 = vsel %vm1625, %v3129, %v3130
      %v3132 = vrot.slane %v3130, 2
      %v3138 = vmul.f32 %v1318, %v3122
      %v3139 = vmul.f32 %v1319, %v3125
      %v3140 = vmul.f32 %v1320, %v3128
      %v3141 = vmul.f32 %v1238, %v3131
      %v3142 = vmul.f32 %v1321, %v3132
      %v3143 = vmul.f32 %v1325, %v3122
      %v3144 = vmul.f32 %v1326, %v3125
      %v3145 = vmul.f32 %v1240, %v3128
      %v3146 = vmul.f32 %v1327, %v3131
      %v3147 = vmul.f32 %v1328, %v3132
      %v3148 = vmul.f32 %v1332, %v3122
      %v3149 = vmul.f32 %v1242, %v3125
      %v3150 = vmul.f32 %v1333, %v3128
      %v3151 = vmul.f32 %v1334, %v3131
      %v3152 = vmul.f32 %v1335, %v3132
      %v3153 = vmul.f32 %v1244, %v3122
      %v3154 = vmul.f32 %v1339, %v3125
      %v3155 = vmul.f32 %v1340, %v3128
      %v3156 = vmul.f32 %v1341, %v3131
      %v3157 = vmul.f32 %v1245, %v3132
      %v3158 = vmul.f32 %v1345, %v3122
      %v3159 = vmul.f32 %v1346, %v3125
      %v3160 = vmul.f32 %v1347, %v3128
      %v3161 = vmul.f32 %v1247, %v3131
      %v3162 = vmul.f32 %v1348, %v3132
      %v3163 = vmul.f32 %v1352, %v3122
      %v3164 = vmul.f32 %v1353, %v3125
      %v3165 = vmul.f32 %v1249, %v3128
      %v3166 = vmul.f32 %v1354, %v3131
      %v3167 = vmul.f32 %v1355, %v3132
      %v3168 = vmul.f32 %v1359, %v3122
      %v3169 = vmul.f32 %v1251, %v3125
      %v3170 = vmul.f32 %v1360, %v3128
      %v3171 = vmul.f32 %v1361, %v3131
      %v3172 = vmul.f32 %v1362, %v3132
      %v3173 = vmul.f32 %v1253, %v3122
      %v3174 = vmul.f32 %v1366, %v3125
      %v3175 = vmul.f32 %v1367, %v3128
      %v3176 = vmul.f32 %v1368, %v3131
      %v3177 = vmul.f32 %v1254, %v3132
      %v3218 = vrot.slane %v3138, 7
      %v3219 = vrot.slane %v3218, 2
      %v3220 = vrot.slane %v3139, 7
      %v3221 = vsel %vm1625, %v3219, %v3220
      %v3222 = vrot.slane %v3220, 2
      %v3223 = vrot.slane %v3140, 7
      %v3224 = vsel %vm1625, %v3222, %v3223
      %v3225 = vrot.slane %v3223, 2
      %v3226 = vrot.slane %v3141, 7
      %v3227 = vsel %vm1625, %v3225, %v3226
      %v3228 = vrot.slane %v3226, 2
      %v3229 = vrot.slane %v3142, 7
      %v3230 = vsel %vm1625, %v3228, %v3229
      %v3231 = vrot.slane %v3143, 7
      %v3232 = vrot.slane %v3231, 2
      %v3233 = vrot.slane %v3144, 7
      %v3234 = vsel %vm1625, %v3232, %v3233
      %v3235 = vrot.slane %v3233, 2
      %v3236 = vrot.slane %v3145, 7
      %v3237 = vsel %vm1625, %v3235, %v3236
      %v3238 = vrot.slane %v3236, 2
      %v3239 = vrot.slane %v3146, 7
      %v3240 = vsel %vm1625, %v3238, %v3239
      %v3241 = vrot.slane %v3239, 2
      %v3242 = vrot.slane %v3147, 7
      %v3243 = vsel %vm1625, %v3241, %v3242
      %v3244 = vrot.slane %v3148, 7
      %v3245 = vrot.slane %v3244, 2
      %v3246 = vrot.slane %v3149, 7
      %v3247 = vsel %vm1625, %v3245, %v3246
      %v3248 = vrot.slane %v3246, 2
      %v3249 = vrot.slane %v3150, 7
      %v3250 = vsel %vm1625, %v3248, %v3249
      %v3251 = vrot.slane %v3249, 2
      %v3252 = vrot.slane %v3151, 7
      %v3253 = vsel %vm1625, %v3251, %v3252
      %v3254 = vrot.slane %v3252, 2
      %v3255 = vrot.slane %v3152, 7
      %v3256 = vsel %vm1625, %v3254, %v3255
      %v3257 = vrot.slane %v3153, 7
      %v3258 = vrot.slane %v3257, 2
      %v3259 = vrot.slane %v3154, 7
      %v3260 = vsel %vm1625, %v3258, %v3259
      %v3261 = vrot.slane %v3259, 2
      %v3262 = vrot.slane %v3155, 7
      %v3263 = vsel %vm1625, %v3261, %v3262
      %v3264 = vrot.slane %v3262, 2
      %v3265 = vrot.slane %v3156, 7
      %v3266 = vsel %vm1625, %v3264, %v3265
      %v3267 = vrot.slane %v3265, 2
      %v3268 = vrot.slane %v3157, 7
      %v3269 = vsel %vm1625, %v3267, %v3268
      %v3270 = vrot.slane %v3158, 7
      %v3271 = vrot.slane %v3270, 2
      %v3272 = vrot.slane %v3159, 7
      %v3273 = vsel %vm1625, %v3271, %v3272
      %v3274 = vrot.slane %v3272, 2
      %v3275 = vrot.slane %v3160, 7
      %v3276 = vsel %vm1625, %v3274, %v3275
      %v3277 = vrot.slane %v3275, 2
      %v3278 = vrot.slane %v3161, 7
      %v3279 = vsel %vm1625, %v3277, %v3278
      %v3280 = vrot.slane %v3278, 2
      %v3281 = vrot.slane %v3162, 7
      %v3282 = vsel %vm1625, %v3280, %v3281
      %v3283 = vrot.slane %v3163, 7
      %v3284 = vrot.slane %v3283, 2
      %v3285 = vrot.slane %v3164, 7
      %v3286 = vsel %vm1625, %v3284, %v3285
      %v3287 = vrot.slane %v3285, 2
      %v3288 = vrot.slane %v3165, 7
      %v3289 = vsel %vm1625, %v3287, %v3288
      %v3290 = vrot.slane %v3288, 2
      %v3291 = vrot.slane %v3166, 7
      %v3292 = vsel %vm1625, %v3290, %v3291
      %v3293 = vrot.slane %v3291, 2
      %v3294 = vrot.slane %v3167, 7
      %v3295 = vsel %vm1625, %v3293, %v3294
      %v3296 = vrot.slane %v3168, 7
      %v3297 = vrot.slane %v3296, 2
      %v3298 = vrot.slane %v3169, 7
      %v3299 = vsel %vm1625, %v3297, %v3298
      %v3300 = vrot.slane %v3298, 2
      %v3301 = vrot.slane %v3170, 7
      %v3302 = vsel %vm1625, %v3300, %v3301
      %v3303 = vrot.slane %v3301, 2
      %v3304 = vrot.slane %v3171, 7
      %v3305 = vsel %vm1625, %v3303, %v3304
      %v3306 = vrot.slane %v3304, 2
      %v3307 = vrot.slane %v3172, 7
      %v3308 = vsel %vm1625, %v3306, %v3307
      %v3309 = vrot.slane %v3173, 7
      %v3310 = vrot.slane %v3309, 2
      %v3311 = vrot.slane %v3174, 7
      %v3312 = vsel %vm1625, %v3310, %v3311
      %v3313 = vrot.slane %v3311, 2
      %v3314 = vrot.slane %v3175, 7
      %v3315 = vsel %vm1625, %v3313, %v3314
      %v3316 = vrot.slane %v3314, 2
      %v3317 = vrot.slane %v3176, 7
      %v3318 = vsel %vm1625, %v3316, %v3317
      %v3319 = vrot.slane %v3317, 2
      %v3320 = vrot.slane %v3177, 7
      %v3321 = vsel %vm1625, %v3319, %v3320
      %v3354 = vadd.f32 %v3084, %v3221
      %v3355 = vadd.f32 %v3085, %v3224
      %v3356 = vadd.f32 %v3086, %v3227
      %v3357 = vadd.f32 %v3087, %v3230
      %v3358 = vadd.f32 %v3088, %v3234
      %v3359 = vadd.f32 %v3089, %v3237
      %v3360 = vadd.f32 %v3090, %v3240
      %v3361 = vadd.f32 %v3091, %v3243
      %v3362 = vadd.f32 %v3092, %v3247
      %v3363 = vadd.f32 %v3093, %v3250
      %v3364 = vadd.f32 %v3094, %v3253
      %v3365 = vadd.f32 %v3095, %v3256
      %v3366 = vadd.f32 %v3096, %v3260
      %v3367 = vadd.f32 %v3097, %v3263
      %v3368 = vadd.f32 %v3098, %v3266
      %v3369 = vadd.f32 %v3099, %v3269
      %v3370 = vadd.f32 %v3100, %v3273
      %v3371 = vadd.f32 %v3101, %v3276
      %v3372 = vadd.f32 %v3102, %v3279
      %v3373 = vadd.f32 %v3103, %v3282
      %v3374 = vadd.f32 %v3104, %v3286
      %v3375 = vadd.f32 %v3105, %v3289
      %v3376 = vadd.f32 %v3106, %v3292
      %v3377 = vadd.f32 %v3107, %v3295
      %v3378 = vadd.f32 %v3108, %v3299
      %v3379 = vadd.f32 %v3109, %v3302
      %v3380 = vadd.f32 %v3110, %v3305
      %v3381 = vadd.f32 %v3111, %v3308
      %v3382 = vadd.f32 %v3112, %v3312
      %v3383 = vadd.f32 %v3113, %v3315
      %v3384 = vadd.f32 %v3114, %v3318
      %v3385 = vadd.f32 %v3115, %v3321
      %v3386 = vld [vmem:[%s5] sm:$0x1]
      %v3388 = vperm.slane %v3386, 0
      %v3390 = vrot.slane %v3388, 2
      %v3391 = vrot.slane %v3388, 4
      %v3392 = vrot.slane %v3388, 6
      %v3396 = vadd.f32 %v3354, %v3388
      %v3397 = vadd.f32 %v3355, %v3390
      %v3398 = vadd.f32 %v3356, %v3391
      %v3399 = vadd.f32 %v3357, %v3392
      %v3400 = vadd.f32 %v3358, %v3388
      %v3401 = vadd.f32 %v3359, %v3390
      %v3402 = vadd.f32 %v3360, %v3391
      %v3403 = vadd.f32 %v3361, %v3392
      %v3404 = vadd.f32 %v3362, %v3388
      %v3405 = vadd.f32 %v3363, %v3390
      %v3406 = vadd.f32 %v3364, %v3391
      %v3407 = vadd.f32 %v3365, %v3392
      %v3408 = vadd.f32 %v3366, %v3388
      %v3409 = vadd.f32 %v3367, %v3390
      %v3410 = vadd.f32 %v3368, %v3391
      %v3411 = vadd.f32 %v3369, %v3392
      %v3412 = vadd.f32 %v3370, %v3388
      %v3413 = vadd.f32 %v3371, %v3390
      %v3414 = vadd.f32 %v3372, %v3391
      %v3415 = vadd.f32 %v3373, %v3392
      %v3416 = vadd.f32 %v3374, %v3388
      %v3417 = vadd.f32 %v3375, %v3390
      %v3418 = vadd.f32 %v3376, %v3391
      %v3419 = vadd.f32 %v3377, %v3392
      %v3420 = vadd.f32 %v3378, %v3388
      %v3421 = vadd.f32 %v3379, %v3390
      %v3422 = vadd.f32 %v3380, %v3391
      %v3423 = vadd.f32 %v3381, %v3392
      %v3424 = vadd.f32 %v3382, %v3388
      %v3425 = vadd.f32 %v3383, %v3390
      %v3426 = vadd.f32 %v3384, %v3391
      %v3427 = vadd.f32 %v3385, %v3392
      %v3428 = vmax.f32 %v3396, 0.0
      %v3429 = vmax.f32 %v3397, 0.0
      %v3430 = vmax.f32 %v3398, 0.0
      %v3431 = vmax.f32 %v3399, 0.0
      %v3432 = vmax.f32 %v3400, 0.0
      %v3433 = vmax.f32 %v3401, 0.0
      %v3434 = vmax.f32 %v3402, 0.0
      %v3435 = vmax.f32 %v3403, 0.0
      %v3436 = vmax.f32 %v3404, 0.0
      %v3437 = vmax.f32 %v3405, 0.0
      %v3438 = vmax.f32 %v3406, 0.0
      %v3439 = vmax.f32 %v3407, 0.0
      %v3440 = vmax.f32 %v3408, 0.0
      %v3441 = vmax.f32 %v3409, 0.0
      %v3442 = vmax.f32 %v3410, 0.0
      %v3443 = vmax.f32 %v3411, 0.0
      %v3444 = vmax.f32 %v3412, 0.0
      %v3445 = vmax.f32 %v3413, 0.0
      %v3446 = vmax.f32 %v3414, 0.0
      %v3447 = vmax.f32 %v3415, 0.0
      %v3448 = vmax.f32 %v3416, 0.0
      %v3449 = vmax.f32 %v3417, 0.0
      %v3450 = vmax.f32 %v3418, 0.0
      %v3451 = vmax.f32 %v3419, 0.0
      %v3452 = vmax.f32 %v3420, 0.0
      %v3453 = vmax.f32 %v3421, 0.0
      %v3454 = vmax.f32 %v3422, 0.0
      %v3455 = vmax.f32 %v3423, 0.0
      %v3456 = vmax.f32 %v3424, 0.0
      %v3457 = vmax.f32 %v3425, 0.0
      %v3458 = vmax.f32 %v3426, 0.0
      %v3459 = vmax.f32 %v3427, 0.0
      %v3460 = vld [vmem:[%s6] sm:$0xff]
      %v3461 = vld [vmem:[%s6 + $0x8] sm:$0xff]
      %v3462 = vld [vmem:[%s6 + $0x10] sm:$0xff]
      %v3463 = vld [vmem:[%s7] sm:$0x1]
      %v3465 = vperm.slane %v3463, 0
      %3499 = vst [vmem:[#allocation1] ss:$4 sm:$0xff] %v3428
      %s3500 = scalar_lea.vmem [#allocation1], 1
      %3501 = vst [vmem:[%s3500] ss:$4 sm:$0xff] %v3429
      %s3502 = scalar_lea.vmem [#allocation1], 2
      %3503 = vst [vmem:[%s3502] ss:$4 sm:$0xff] %v3430
      %s3504 = scalar_lea.vmem [#allocation1], 3
      %3505 = vst [vmem:[%s3504] ss:$4 sm:$0xff] %v3431
      %s3506 = scalar_lea.vmem [#allocation1], 32
      %3507 = vst [vmem:[%s3506] ss:$4 sm:$0xff] %v3432
      %s3508 = scalar_lea.vmem [#allocation1], 33
      %3509 = vst [vmem:[%s3508] ss:$4 sm:$0xff] %v3433
      %s3510 = scalar_lea.vmem [#allocation1], 34
      %3511 = vst [vmem:[%s3510] ss:$4 sm:$0xff] %v3434
      %s3512 = scalar_lea.vmem [#allocation1], 35
      %3513 = vst [vmem:[%s3512] ss:$4 sm:$0xff] %v3435
      %v3514 = vld.sshfl [vmem:[#allocation1] sm:$0xff pattern:$0x73625140]
      %v3515 = vld.sshfl [vmem:[#allocation1 + $0x20] sm:$0xff pattern:$0x73625140]
      %3516 = vst [vmem:[#allocation1] ss:$4 sm:$0xff] %v3436
      %3517 = vst [vmem:[%s3500] ss:$4 sm:$0xff] %v3437
      %3518 = vst [vmem:[%s3502] ss:$4 sm:$0xff] %v3438
      %3519 = vst [vmem:[%s3504] ss:$4 sm:$0xff] %v3439
      %3520 = vst [vmem:[%s3506] ss:$4 sm:$0xff] %v3440
      %3521 = vst [vmem:[%s3508] ss:$4 sm:$0xff] %v3441
      %3522 = vst [vmem:[%s3510] ss:$4 sm:$0xff] %v3442
      %3523 = vst [vmem:[%s3512] ss:$4 sm:$0xff] %v3443
      %v3524 = vld.sshfl [vmem:[#allocation1] sm:$0xff pattern:$0x73625140]
      %v3525 = vld.sshfl [vmem:[#allocation1 + $0x20] sm:$0xff pattern:$0x73625140]
      %3526 = vst [vmem:[#allocation1] ss:$4 sm:$0xff] %v3444
      %3527 = vst [vmem:[%s3500] ss:$4 sm:$0xff] %v3445
      %3528 = vst [vmem:[%s3502] ss:$4 sm:$0xff] %v3446
      %3529 = vst [vmem:[%s3504] ss:$4 sm:$0xff] %v3447
      %3530 = vst [vmem:[%s3506] ss:$4 sm:$0xff] %v3448
      %3531 = vst [vmem:[%s3508] ss:$4 sm:$0xff] %v3449
      %3532 = vst [vmem:[%s3510] ss:$4 sm:$0xff] %v3450
      %3533 = vst [vmem:[%s3512] ss:$4 sm:$0xff] %v3451
      %v3534 = vld.sshfl [vmem:[#allocation1] sm:$0xff pattern:$0x73625140]
      %v3535 = vld.sshfl [vmem:[#allocation1 + $0x20] sm:$0xff pattern:$0x73625140]
      %3536 = vst [vmem:[#allocation1] ss:$4 sm:$0xff] %v3452
      %3537 = vst [vmem:[%s3500] ss:$4 sm:$0xff] %v3453
      %3538 = vst [vmem:[%s3502] ss:$4 sm:$0xff] %v3454
      %3539 = vst [vmem:[%s3504] ss:$4 sm:$0xff] %v3455
      %3540 = vst [vmem:[%s3506] ss:$4 sm:$0xff] %v3456
      %3541 = vst [vmem:[%s3508] ss:$4 sm:$0xff] %v3457
      %3542 = vst [vmem:[%s3510] ss:$4 sm:$0xff] %v3458
      %3543 = vst [vmem:[%s3512] ss:$4 sm:$0xff] %v3459
      %v3544 = vld.sshfl [vmem:[#allocation1] sm:$0xff pattern:$0x73625140]
      %v3545 = vld.sshfl [vmem:[#allocation1 + $0x20] sm:$0xff pattern:$0x73625140]
      %vm3546 = vcmask 195584
      %v3547 = vsel %vm3546, %v3514, 0
      %v3549 = vsel %vm3546, %v3515, 0
      %v3551 = vsel %vm3546, %v3524, 0
      %v3553 = vsel %vm3546, %v3525, 0
      %v3555 = vsel %vm3546, %v3534, 0
      %v3557 = vsel %vm3546, %v3535, 0
      %v3559 = vsel %vm3546, %v3544, 0
      %v3561 = vsel %vm3546, %v3545, 0
      %3563 = vmatpush.msra.mxu0 0.0
      %3564 = vmatpush.msra.mxu0 0.0
      %3565 = vmatpush.msra.mxu0 0.0
      %3566 = vmatpush.msra.mxu0 0.0
      %3567 = vmatpush.msra.mxu0 0.0
      %3568 = vmatpush.msra.mxu0 0.0
      %3569 = vmatpush.msra.mxu0 0.0
      %3570 = vmatpush.msra.mxu0 0.0
      %3571 = vmatpush.msra.mxu0 0.0
      %3572 = vmatpush.msra.mxu0 0.0
      %3573 = vmatpush.msra.mxu0 0.0
      %3574 = vmatpush.msra.mxu0 0.0
      %3575 = vmatpush.msra.mxu0 0.0
      %3576 = vmatpush.msra.mxu0 %v3462
      %3577 = vmatpush.msra.mxu0 %v3461
      %3578 = vmatpush.msra.mxu0 %v3460
      %3579 = vmatmul.f32.gmra.mxu0 %v3547
      %v3580 = vpop.f32.mrf.mxu0
      %v3581 = vadd.f32 %v3465, %v3580
      %3582 = vmatmul.f32.gmra.mxu0 %v3549
      %v3583 = vpop.f32.mrf.mxu0
      %v3584 = vadd.f32 %v3465, %v3583
      %3585 = vmatmul.f32.gmra.mxu0 %v3551
      %v3586 = vpop.f32.mrf.mxu0
      %v3587 = vadd.f32 %v3465, %v3586
      %3588 = vmatmul.f32.gmra.mxu0 %v3553
      %v3589 = vpop.f32.mrf.mxu0
      %v3590 = vadd.f32 %v3465, %v3589
      %3591 = vmatmul.f32.gmra.mxu0 %v3555
      %v3592 = vpop.f32.mrf.mxu0
      %v3593 = vadd.f32 %v3465, %v3592
      %3594 = vmatmul.f32.gmra.mxu0 %v3557
      %v3595 = vpop.f32.mrf.mxu0
      %v3596 = vadd.f32 %v3465, %v3595
      %3597 = vmatmul.f32.gmra.mxu0 %v3559
      %v3598 = vpop.f32.mrf.mxu0
      %v3599 = vadd.f32 %v3465, %v3598
      %3600 = vmatmul.f32.gmra.mxu0 %v3561
      %v3601 = vpop.f32.mrf.mxu0
      %v3602 = vadd.f32 %v3465, %v3601
      %3603 = vdwg.mxu0
      %vm3604 = vcmask 64512
      %3605 = vst.msk [vmem:[%s305] sm:$0xff] %vm3604, %v3581
      %3606 = vst.msk [vmem:[%s305 + $0x8] sm:$0xff] %vm3604, %v3584
      %3607 = vst.msk [vmem:[%s305 + $0x10] sm:$0xff] %vm3604, %v3587
      %3608 = vst.msk [vmem:[%s305 + $0x18] sm:$0xff] %vm3604, %v3590
      %3609 = vst.msk [vmem:[%s305 + $0x20] sm:$0xff] %vm3604, %v3593
      %3610 = vst.msk [vmem:[%s305 + $0x28] sm:$0xff] %vm3604, %v3596
      %3611 = vst.msk [vmem:[%s305 + $0x30] sm:$0xff] %vm3604, %v3599
      %3612 = vst.msk [vmem:[%s305 + $0x38] sm:$0xff] %vm3604, %v3602
      %p3613 = scmp.lt.s32.totalorder %s19, 1
      %s3614 = scalar_select %p3613, %s19, 1
      %s3615 = smul.addr %s3614, 8
      %s3616 = smul.addr %s3615, 8
      %s3617 = scalar_lea.vmem %s8, %s3616
      // Predicated region
      $region53: #{linear_bottleneck_forward.1} parent=51 // pred_check
        %p3618 = pneg %p210
      $region54: #{linear_bottleneck_forward.1} parent=51 // pred_check_branch
        %3620 = sbr.rel (%p3618) target = $region56
      $region55: #{linear_bottleneck_forward.1} parent=51 // pred_region
        _
      $region56: #{linear_bottleneck_forward.1} parent=51 // pred_fallthru
        _
    $region52: #{linear_bottleneck_forward.1} parent=5 // pred_fallthru
      _
    %p3621 = scmp.le.s32.totalorder 2, %s14
    // Predicated region
    $region57: #{linear_bottleneck_forward.1} parent=5 // pred_check
      %p3622 = pneg %p3621
    $region58: #{linear_bottleneck_forward.1} parent=5 // pred_check_branch
      %3624 = sbr.rel (%p3622) target = $region60
    $region59: #{linear_bottleneck_forward.1} parent=5 // pred_region
      %s3625 = ssub.s32 %s14, 2
      // Predicated region
      $region61: #{linear_bottleneck_forward.1} parent=59 // pred_check
        %p3626 = pneg %p216
      $region62: #{linear_bottleneck_forward.1} parent=59 // pred_check_branch
        %3628 = sbr.rel (%p3626) target = $region64
      $region63: #{linear_bottleneck_forward.1} parent=59 // pred_region
        %p3629 = scmp.lt.s32.totalorder %s20, 1
        %s3630 = scalar_select %p3629, %s20, 1
        %s3631 = smul.addr %s3630, 8
        %s3632 = smul.addr %s3631, 8
        %s3633 = scalar_lea.vmem %s8, %s3632
      $region64: #{linear_bottleneck_forward.1} parent=59 // pred_fallthru
        _
    $region60: #{linear_bottleneck_forward.1} parent=5 // pred_fallthru
      _
  $region6: #{linear_bottleneck_forward.1} parent=0 // loop_footer
    %s18 = sadd.s32 1, %s14
  $region7: #{linear_bottleneck_forward.1} parent=0 // loop_footer_branch
    %13 = sbr.rel target = $region3
  $region8: #{linear_bottleneck_forward.1} parent=0 // loop_exit
    _

</llo_original>
